<compile_context>
chip_gen: v6e
topology: v6e:2x2x1
jax: 0.10.0
libtpu: 0.0.40
codegen_flags: <defaults>
</compile_context>

<pallas_src>
import functools

import jax
import jax.numpy as jnp
from jax.experimental import pallas as pl
from jax.experimental.pallas import tpu as pltpu


def _rnn_block_kernel(x_ref, wih_t_ref, whh_t_ref, b_ref, wfc1_t_ref, bfc1_ref,
                      out_ref):
    """One batch-block of independent sequences, time-major layout.

    x_ref:   (seq, block_b, input_size) f32
    out_ref: (seq, block_b, 16)         f32
    wih_t (in, H), whh_t (H, H), wfc1_t (H, 16) are pre-transposed;
    b = (b_ih + b_hh) as (1, H); bfc1 as (1, 16).
    """
    seq, block_b, in_size = x_ref.shape
    hidden = whh_t_ref.shape[0]
    rows = seq * block_b

    # Hoist loop-invariant weight loads and bias broadcasts out of the recurrence.
    wih_t = wih_t_ref[...]
    whh_t = whh_t_ref[...]
    wfc1_t = wfc1_t_ref[...]
    b = jnp.broadcast_to(b_ref[...], (rows, hidden))
    bfc1 = jnp.broadcast_to(bfc1_ref[...], (rows, 16))

    # --- Hoisted input projection: one MXU push for all timesteps (off the
    #     critical path; W_ih never touches the recurrent chain). ---
    x_all = x_ref[...].reshape(rows, in_size)               # free reshape (leading dims)
    xproj_all = (jnp.dot(x_all, wih_t, preferred_element_type=jnp.float32) + b
                 ).reshape(seq, block_b, hidden)

    # --- Recurrence: serial chain is exactly dot(h, W_hh) + add + tanh per step.
    #     h is carried purely in vregs across the statically unrolled steps. ---
    h = jnp.zeros((block_b, hidden), jnp.float32)
    hs = []
    for t in range(seq):
        h = jnp.tanh(xproj_all[t]
                     + jnp.dot(h, whh_t, preferred_element_type=jnp.float32))
        hs.append(h)

    # --- Deferred fc1 epilogue: single matmul + ONE full-block store. ---
    h_all = jnp.concatenate(hs, axis=0)                     # (rows, hidden), time-major
    out = jnp.dot(h_all, wfc1_t, preferred_element_type=jnp.float32) + bfc1
    out_ref[...] = out.reshape(seq, block_b, 16)


def prepare_params(params):
    """One-time parameter layout prep — keep this OUT of the per-call hot path."""
    return {
        "wih_t": jnp.asarray(params["w_ih"].T, jnp.float32),            # (in, H)
        "whh_t": jnp.asarray(params["w_hh"].T, jnp.float32),            # (H, H)
        "b": jnp.asarray((params["b_ih"] + params["b_hh"])[None, :],    # (1, H)
                         jnp.float32),
        "wfc1_t": jnp.asarray(params["w_fc1"].T, jnp.float32),          # (H, 16)
        "bfc1": jnp.asarray(params["b_fc1"][None, :], jnp.float32),     # (1, 16)
    }


def _pick_block_b(batch, max_block=512):
    """Largest multiple-of-8 divisor of batch, capped at max_block (else full batch).

    Single-TC v5e/v6e: grid=1 (block_b=batch) is optimal at moderate batch.
    Dual-TC v7x: pass block_b=batch//2 explicitly so the "parallel" grid axis
    shards across both TensorCores.
    """
    if batch <= 8:
        return batch
    best = None
    for d in range(8, min(batch, max_block) + 1, 8):
        if batch % d == 0:
            best = d
    return best if best is not None else batch


@functools.partial(jax.jit, static_argnames=("block_b",))
def rnn_classifier_forward(x, prepared, block_b=None):
    """Batched forward: x (batch, seq, input_size) -> (batch, seq, 16).

    Each sequence follows the module's semantics exactly (its own h0 = zeros).
    """
    x = x.astype(jnp.float32)
    batch, seq, in_size = x.shape
    hidden = prepared["whh_t"].shape[0]

    if block_b is None:
        block_b = _pick_block_b(batch)
    block_b = min(block_b, batch)
    assert batch % block_b == 0, "batch must be a multiple of block_b"
    assert block_b == batch or block_b % 8 == 0, "block_b must be 8-aligned"
    grid = (batch // block_b,)

    # Time-major inside the kernel so per-step slices and the final hidden-state
    # concat are leading-axis slabs (no sublane shuffles).  The two wrapper
    # transposes cost two tiny extra HBM passes (32 KiB each at batch=64).
    x_tm = jnp.transpose(x, (1, 0, 2))  # (seq, batch, in)

    out_tm = pl.pallas_call(
        _rnn_block_kernel,
        out_shape=jax.ShapeDtypeStruct((seq, batch, 16), jnp.float32),
        grid=grid,
        in_specs=[
            pl.BlockSpec((seq, block_b, in_size), lambda i: (0, i, 0)),
            pl.BlockSpec((in_size, hidden), lambda i: (0, 0)),
            pl.BlockSpec((hidden, hidden), lambda i: (0, 0)),
            pl.BlockSpec((1, hidden), lambda i: (0, 0)),
            pl.BlockSpec((hidden, 16), lambda i: (0, 0)),
            pl.BlockSpec((1, 16), lambda i: (0, 0)),
        ],
        out_specs=pl.BlockSpec((seq, block_b, 16), lambda i: (0, i, 0)),
        compiler_params=pltpu.CompilerParams(
            dimension_semantics=("parallel",)),
    )(x_tm, prepared["wih_t"], prepared["whh_t"], prepared["b"],
      prepared["wfc1_t"], prepared["bfc1"])

    return jnp.transpose(out_tm, (1, 0, 2))  # back to batch_first (B, seq, 16)


def rnn_classifier_forward_single(x, prepared):
    """Exact module call signature: x (seq, input_size) -> (seq, 16)."""
    return rnn_classifier_forward(x[None], prepared)[0]


def reference_forward(x, params):
    """Plain-JAX reference of the module's forward for one sequence."""
    x = x.astype(jnp.float32)
    hidden = params["w_hh"].shape[0]
    h = jnp.zeros((hidden,), jnp.float32)
    hs = []
    for t in range(x.shape[0]):
        h = jnp.tanh(x[t] @ params["w_ih"].T + params["b_ih"]
                     + h @ params["w_hh"].T + params["b_hh"])
        hs.append(h)
    out = jnp.stack(hs)
    return out @ params["w_fc1"].T + params["b_fc1"]


def init_params(key, input_size, hidden_size):
    """Deterministic init mimicking PyTorch default U(-k, k) ranges."""
    ks = jax.random.split(key, 6)
    k_rnn = 1.0 / jnp.sqrt(hidden_size)
    k_fc1 = 1.0 / jnp.sqrt(hidden_size)
    return {
        "w_ih":  jax.random.uniform(ks[0], (hidden_size, input_size),
                                    jnp.float32, -k_rnn, k_rnn),
        "w_hh":  jax.random.uniform(ks[1], (hidden_size, hidden_size),
                                    jnp.float32, -k_rnn, k_rnn),
        "b_ih":  jax.random.uniform(ks[2], (hidden_size,),
                                    jnp.float32, -k_rnn, k_rnn),
        "b_hh":  jax.random.uniform(ks[3], (hidden_size,),
                                    jnp.float32, -k_rnn, k_rnn),
        "w_fc1": jax.random.uniform(ks[4], (16, hidden_size),
                                    jnp.float32, -k_fc1, k_fc1),
        "b_fc1": jax.random.uniform(ks[5], (16,),
                                    jnp.float32, -k_fc1, k_fc1),
    }


if __name__ == "__main__":
    key = jax.random.PRNGKey(0)
    k_x, k_p = jax.random.split(key)

    # hidden=64 is forced by h0 = zeros(1, 64) in the module's forward.
    batch, seq, input_size, hidden_size = 64, 8, 16, 64
    x = jax.random.normal(k_x, (batch, seq, input_size), jnp.float32)
    params = init_params(k_p, input_size, hidden_size)
    prepared = prepare_params(params)  # one-time layout prep

    # Batched: many independent sequences per pallas_call (auto block_b=64, grid=1).
    out = jax.block_until_ready(rnn_classifier_forward(x, prepared))
    ref = jax.vmap(reference_forward, in_axes=(0, None))(x, params)
    assert out.shape == (batch, seq, 16)
    assert jnp.allclose(out, ref, atol=1e-5, rtol=1e-5)

    # Explicit block_b override (e.g. what you would pass on dual-TC v7x: batch // 2).
    out2 = jax.block_until_ready(rnn_classifier_forward(x, prepared, block_b=32))
    assert jnp.allclose(out2, ref, atol=1e-5, rtol=1e-5)

    # Exact (unbatched) module semantics: x (seq, input) -> (seq, 16).
    out1 = jax.block_until_ready(rnn_classifier_forward_single(x[0], prepared))
    ref1 = reference_forward(x[0], params)
    assert out1.shape == (seq, 16)
    assert jnp.allclose(out1, ref1, atol=1e-5, rtol=1e-5)

    print("KERNEL_OK")
</pallas_src>

<mosaic_0001>
module attributes {stable_mosaic.version = 11 : i64} {
  func.func @_rnn_block_kernel(%arg0: i32, %arg1: memref<8x64x16xf32, #tpu.memory_space<vmem>>, %arg2: memref<16x64xf32, #tpu.memory_space<vmem>>, %arg3: memref<64x64xf32, #tpu.memory_space<vmem>>, %arg4: memref<1x64xf32, #tpu.memory_space<vmem>>, %arg5: memref<64x16xf32, #tpu.memory_space<vmem>>, %arg6: memref<1x16xf32, #tpu.memory_space<vmem>>, %arg7: memref<8x64x16xf32, #tpu.memory_space<vmem>>) attributes {dimension_semantics = [#tpu.dimension_semantics<parallel>], iteration_bounds = array<i64: 1>, scalar_prefetch = 0 : i64, scratch_operands = 0 : i64, tpu.core_type = #tpu.core_type<tc>, window_params = [{transform_indices = @transform_0, window_bounds = array<i64: 8, 64, 16>}, {pipeline_mode = #tpu.pipeline_mode<synchronous>, transform_indices = @transform_1, window_bounds = array<i64: 16, 64>}, {pipeline_mode = #tpu.pipeline_mode<synchronous>, transform_indices = @transform_2, window_bounds = array<i64: 64, 64>}, {pipeline_mode = #tpu.pipeline_mode<synchronous>, transform_indices = @transform_3, window_bounds = array<i64: 1, 64>}, {pipeline_mode = #tpu.pipeline_mode<synchronous>, transform_indices = @transform_4, window_bounds = array<i64: 64, 16>}, {pipeline_mode = #tpu.pipeline_mode<synchronous>, transform_indices = @transform_5, window_bounds = array<i64: 1, 16>}, {transform_indices = @transform_6, window_bounds = array<i64: 8, 64, 16>}]} {
    %c0 = arith.constant 0 : index
    %c0_0 = arith.constant 0 : index
    %0 = vector.load %arg2[%c0, %c0_0] : memref<16x64xf32, #tpu.memory_space<vmem>>, vector<16x64xf32>
    %c0_1 = arith.constant 0 : index
    %c0_2 = arith.constant 0 : index
    %1 = vector.load %arg3[%c0_1, %c0_2] : memref<64x64xf32, #tpu.memory_space<vmem>>, vector<64x64xf32>
    %c0_3 = arith.constant 0 : index
    %c0_4 = arith.constant 0 : index
    %2 = vector.load %arg5[%c0_3, %c0_4] : memref<64x16xf32, #tpu.memory_space<vmem>>, vector<64x16xf32>
    %c0_5 = arith.constant 0 : index
    %c0_6 = arith.constant 0 : index
    %3 = vector.load %arg4[%c0_5, %c0_6] : memref<1x64xf32, #tpu.memory_space<vmem>>, vector<1x64xf32>
    %4 = vector.shape_cast %3 : vector<1x64xf32> to vector<1x64xf32>
    %5 = vector.broadcast %4 : vector<1x64xf32> to vector<512x64xf32>
    %c0_7 = arith.constant 0 : index
    %c0_8 = arith.constant 0 : index
    %6 = vector.load %arg6[%c0_7, %c0_8] : memref<1x16xf32, #tpu.memory_space<vmem>>, vector<1x16xf32>
    %7 = vector.shape_cast %6 : vector<1x16xf32> to vector<1x16xf32>
    %8 = vector.broadcast %7 : vector<1x16xf32> to vector<512x16xf32>
    %c0_9 = arith.constant 0 : index
    %c0_10 = arith.constant 0 : index
    %c0_11 = arith.constant 0 : index
    %9 = vector.load %arg1[%c0_9, %c0_10, %c0_11] : memref<8x64x16xf32, #tpu.memory_space<vmem>>, vector<8x64x16xf32>
    %10 = vector.shape_cast %9 : vector<8x64x16xf32> to vector<512x16xf32>
    %cst = arith.constant dense<0.000000e+00> : vector<512x64xf32>
    %11 = tpu.matmul %10, %0, %cst {dimension_numbers = #tpu.dot_dimension_numbers<[1], [0], [0], [1], [0, 0, 1, 1], [], []>} : vector<512x16xf32>, vector<16x64xf32>, vector<512x64xf32> -> vector<512x64xf32>
    %12 = arith.addf %11, %5 : vector<512x64xf32>
    %13 = vector.shape_cast %12 : vector<512x64xf32> to vector<8x64x64xf32>
    %cst_12 = arith.constant 0.000000e+00 : f32
    %14 = vector.broadcast %cst_12 : f32 to vector<64x64xf32>
    %15 = vector.extract_strided_slice %13 {offsets = [0, 0, 0], sizes = [1, 64, 64], strides = [1, 1, 1]} : vector<8x64x64xf32> to vector<1x64x64xf32>
    %16 = vector.shape_cast %15 : vector<1x64x64xf32> to vector<64x64xf32>
    %cst_13 = arith.constant dense<0.000000e+00> : vector<64x64xf32>
    %17 = tpu.matmul %14, %1, %cst_13 {dimension_numbers = #tpu.dot_dimension_numbers<[1], [0], [0], [1], [0, 0, 1, 1], [], []>} : vector<64x64xf32>, vector<64x64xf32>, vector<64x64xf32> -> vector<64x64xf32>
    %18 = arith.addf %16, %17 : vector<64x64xf32>
    %19 = math.tanh %18 : vector<64x64xf32>
    %20 = vector.extract_strided_slice %13 {offsets = [1, 0, 0], sizes = [1, 64, 64], strides = [1, 1, 1]} : vector<8x64x64xf32> to vector<1x64x64xf32>
    %21 = vector.shape_cast %20 : vector<1x64x64xf32> to vector<64x64xf32>
    %cst_14 = arith.constant dense<0.000000e+00> : vector<64x64xf32>
    %22 = tpu.matmul %19, %1, %cst_14 {dimension_numbers = #tpu.dot_dimension_numbers<[1], [0], [0], [1], [0, 0, 1, 1], [], []>} : vector<64x64xf32>, vector<64x64xf32>, vector<64x64xf32> -> vector<64x64xf32>
    %23 = arith.addf %21, %22 : vector<64x64xf32>
    %24 = math.tanh %23 : vector<64x64xf32>
    %25 = vector.extract_strided_slice %13 {offsets = [2, 0, 0], sizes = [1, 64, 64], strides = [1, 1, 1]} : vector<8x64x64xf32> to vector<1x64x64xf32>
    %26 = vector.shape_cast %25 : vector<1x64x64xf32> to vector<64x64xf32>
    %cst_15 = arith.constant dense<0.000000e+00> : vector<64x64xf32>
    %27 = tpu.matmul %24, %1, %cst_15 {dimension_numbers = #tpu.dot_dimension_numbers<[1], [0], [0], [1], [0, 0, 1, 1], [], []>} : vector<64x64xf32>, vector<64x64xf32>, vector<64x64xf32> -> vector<64x64xf32>
    %28 = arith.addf %26, %27 : vector<64x64xf32>
    %29 = math.tanh %28 : vector<64x64xf32>
    %30 = vector.extract_strided_slice %13 {offsets = [3, 0, 0], sizes = [1, 64, 64], strides = [1, 1, 1]} : vector<8x64x64xf32> to vector<1x64x64xf32>
    %31 = vector.shape_cast %30 : vector<1x64x64xf32> to vector<64x64xf32>
    %cst_16 = arith.constant dense<0.000000e+00> : vector<64x64xf32>
    %32 = tpu.matmul %29, %1, %cst_16 {dimension_numbers = #tpu.dot_dimension_numbers<[1], [0], [0], [1], [0, 0, 1, 1], [], []>} : vector<64x64xf32>, vector<64x64xf32>, vector<64x64xf32> -> vector<64x64xf32>
    %33 = arith.addf %31, %32 : vector<64x64xf32>
    %34 = math.tanh %33 : vector<64x64xf32>
    %35 = vector.extract_strided_slice %13 {offsets = [4, 0, 0], sizes = [1, 64, 64], strides = [1, 1, 1]} : vector<8x64x64xf32> to vector<1x64x64xf32>
    %36 = vector.shape_cast %35 : vector<1x64x64xf32> to vector<64x64xf32>
    %cst_17 = arith.constant dense<0.000000e+00> : vector<64x64xf32>
    %37 = tpu.matmul %34, %1, %cst_17 {dimension_numbers = #tpu.dot_dimension_numbers<[1], [0], [0], [1], [0, 0, 1, 1], [], []>} : vector<64x64xf32>, vector<64x64xf32>, vector<64x64xf32> -> vector<64x64xf32>
    %38 = arith.addf %36, %37 : vector<64x64xf32>
    %39 = math.tanh %38 : vector<64x64xf32>
    %40 = vector.extract_strided_slice %13 {offsets = [5, 0, 0], sizes = [1, 64, 64], strides = [1, 1, 1]} : vector<8x64x64xf32> to vector<1x64x64xf32>
    %41 = vector.shape_cast %40 : vector<1x64x64xf32> to vector<64x64xf32>
    %cst_18 = arith.constant dense<0.000000e+00> : vector<64x64xf32>
    %42 = tpu.matmul %39, %1, %cst_18 {dimension_numbers = #tpu.dot_dimension_numbers<[1], [0], [0], [1], [0, 0, 1, 1], [], []>} : vector<64x64xf32>, vector<64x64xf32>, vector<64x64xf32> -> vector<64x64xf32>
    %43 = arith.addf %41, %42 : vector<64x64xf32>
    %44 = math.tanh %43 : vector<64x64xf32>
    %45 = vector.extract_strided_slice %13 {offsets = [6, 0, 0], sizes = [1, 64, 64], strides = [1, 1, 1]} : vector<8x64x64xf32> to vector<1x64x64xf32>
    %46 = vector.shape_cast %45 : vector<1x64x64xf32> to vector<64x64xf32>
    %cst_19 = arith.constant dense<0.000000e+00> : vector<64x64xf32>
    %47 = tpu.matmul %44, %1, %cst_19 {dimension_numbers = #tpu.dot_dimension_numbers<[1], [0], [0], [1], [0, 0, 1, 1], [], []>} : vector<64x64xf32>, vector<64x64xf32>, vector<64x64xf32> -> vector<64x64xf32>
    %48 = arith.addf %46, %47 : vector<64x64xf32>
    %49 = math.tanh %48 : vector<64x64xf32>
    %50 = vector.extract_strided_slice %13 {offsets = [7, 0, 0], sizes = [1, 64, 64], strides = [1, 1, 1]} : vector<8x64x64xf32> to vector<1x64x64xf32>
    %51 = vector.shape_cast %50 : vector<1x64x64xf32> to vector<64x64xf32>
    %cst_20 = arith.constant dense<0.000000e+00> : vector<64x64xf32>
    %52 = tpu.matmul %49, %1, %cst_20 {dimension_numbers = #tpu.dot_dimension_numbers<[1], [0], [0], [1], [0, 0, 1, 1], [], []>} : vector<64x64xf32>, vector<64x64xf32>, vector<64x64xf32> -> vector<64x64xf32>
    %53 = arith.addf %51, %52 : vector<64x64xf32>
    %54 = math.tanh %53 : vector<64x64xf32>
    %55 = tpu.concatenate %19, %24, %29, %34, %39, %44, %49, %54 in 0 : vector<64x64xf32>, vector<64x64xf32>, vector<64x64xf32>, vector<64x64xf32>, vector<64x64xf32>, vector<64x64xf32>, vector<64x64xf32>, vector<64x64xf32> -> vector<512x64xf32>
    %cst_21 = arith.constant dense<0.000000e+00> : vector<512x16xf32>
    %56 = tpu.matmul %55, %2, %cst_21 {dimension_numbers = #tpu.dot_dimension_numbers<[1], [0], [0], [1], [0, 0, 1, 1], [], []>} : vector<512x64xf32>, vector<64x16xf32>, vector<512x16xf32> -> vector<512x16xf32>
    %57 = arith.addf %56, %8 : vector<512x16xf32>
    %58 = vector.shape_cast %57 : vector<512x16xf32> to vector<8x64x16xf32>
    %c0_22 = arith.constant 0 : index
    %c0_23 = arith.constant 0 : index
    %c0_24 = arith.constant 0 : index
    %59 = vector.load %arg7[%c0_22, %c0_23, %c0_24] : memref<8x64x16xf32, #tpu.memory_space<vmem>>, vector<8x64x16xf32>
    tpu.vector_store %arg7[%c0_22, %c0_23, %c0_24], %58 {strides = array<i32>} : memref<8x64x16xf32, #tpu.memory_space<vmem>>, vector<8x64x16xf32>,
    return
  }
  func.func @transform_0(%arg0: i32) -> (i32, i32, i32) {
    %c0_i32 = arith.constant 0 : i32
    %c0_i32_0 = arith.constant 0 : i32
    %c0_i32_1 = arith.constant 0 : i32
    return %c0_i32, %arg0, %c0_i32_0 : i32, i32, i32
  }
  func.func @transform_1(%arg0: i32) -> (i32, i32) {
    %c0_i32 = arith.constant 0 : i32
    %c0_i32_0 = arith.constant 0 : i32
    %c0_i32_1 = arith.constant 0 : i32
    return %c0_i32, %c0_i32_0 : i32, i32
  }
  func.func @transform_2(%arg0: i32) -> (i32, i32) {
    %c0_i32 = arith.constant 0 : i32
    %c0_i32_0 = arith.constant 0 : i32
    %c0_i32_1 = arith.constant 0 : i32
    return %c0_i32, %c0_i32_0 : i32, i32
  }
  func.func @transform_3(%arg0: i32) -> (i32, i32) {
    %c0_i32 = arith.constant 0 : i32
    %c0_i32_0 = arith.constant 0 : i32
    %c0_i32_1 = arith.constant 0 : i32
    return %c0_i32, %c0_i32_0 : i32, i32
  }
  func.func @transform_4(%arg0: i32) -> (i32, i32) {
    %c0_i32 = arith.constant 0 : i32
    %c0_i32_0 = arith.constant 0 : i32
    %c0_i32_1 = arith.constant 0 : i32
    return %c0_i32, %c0_i32_0 : i32, i32
  }
  func.func @transform_5(%arg0: i32) -> (i32, i32) {
    %c0_i32 = arith.constant 0 : i32
    %c0_i32_0 = arith.constant 0 : i32
    %c0_i32_1 = arith.constant 0 : i32
    return %c0_i32, %c0_i32_0 : i32, i32
  }
  func.func @transform_6(%arg0: i32) -> (i32, i32, i32) {
    %c0_i32 = arith.constant 0 : i32
    %c0_i32_0 = arith.constant 0 : i32
    %c0_i32_1 = arith.constant 0 : i32
    return %c0_i32, %arg0, %c0_i32_0 : i32, i32, i32
  }
}

</mosaic_0001>

<llo_original>
// kernel: rnn_classifier_forward.1
$region0: #{rnn_classifier_forward.1}
  #allocation0 [shape = 'u32[]', space=smem, size = 0x4, offset = 0x4, fixed_abs, tag = 'smem constant byte address 0x4 - core index']
  #allocation1 [shape = 'u32[144,128]{1,0:T(1,128)}', space=vmem, size = 0x12000, scoped, tag = 'internal scratch']
  %s0 = inlined_call_operand.vmem [shape: f32[8,64,16], index: 0, kind: input, shape index: {}]
  %s1 = inlined_call_operand.vmem [shape: f32[16,64], index: 1, kind: input, shape index: {}]
  %s2 = inlined_call_operand.vmem [shape: f32[64,64], index: 2, kind: input, shape index: {}]
  %s3 = inlined_call_operand.vmem [shape: f32[1,64], index: 3, kind: input, shape index: {}]
  %s4 = inlined_call_operand.vmem [shape: f32[64,16], index: 4, kind: input, shape index: {}]
  %s5 = inlined_call_operand.vmem [shape: f32[1,16], index: 5, kind: input, shape index: {}]
  %s6 = inlined_call_operand.vmem [shape: f32[8,64,16], index: 6, kind: output, shape index: {}]
  %s7 = sld [smem:[#allocation0]]
  $region34: #{rnn_classifier_forward.1} parent=0
    _
  %s9 = ssub.s32 1, %s7
  %s10 = scalar_select 0, %s9, %s7
  // Predicated region
  $region2: #{rnn_classifier_forward.1} parent=0 // pred_check
    _
  $region3: #{rnn_classifier_forward.1} parent=0 // pred_check_branch
    %12 = sbr.rel (0) target = $region5
  $region4: #{rnn_classifier_forward.1} parent=0 // pred_region
    _
  $region5: #{rnn_classifier_forward.1} parent=0 // pred_fallthru
    _
  // Predicated region
  $region6: #{rnn_classifier_forward.1} parent=0 // pred_check
    _
  $region7: #{rnn_classifier_forward.1} parent=0 // pred_check_branch
    %14 = sbr.rel (0) target = $region9
  $region8: #{rnn_classifier_forward.1} parent=0 // pred_region
    _
  $region9: #{rnn_classifier_forward.1} parent=0 // pred_fallthru
    _
  // Predicated region
  $region10: #{rnn_classifier_forward.1} parent=0 // pred_check
    _
  $region11: #{rnn_classifier_forward.1} parent=0 // pred_check_branch
    %16 = sbr.rel (0) target = $region13
  $region12: #{rnn_classifier_forward.1} parent=0 // pred_region
    _
  $region13: #{rnn_classifier_forward.1} parent=0 // pred_fallthru
    _
  // Predicated region
  $region14: #{rnn_classifier_forward.1} parent=0 // pred_check
    _
  $region15: #{rnn_classifier_forward.1} parent=0 // pred_check_branch
    %18 = sbr.rel (0) target = $region17
  $region16: #{rnn_classifier_forward.1} parent=0 // pred_region
    _
  $region17: #{rnn_classifier_forward.1} parent=0 // pred_fallthru
    _
  // Predicated region
  $region18: #{rnn_classifier_forward.1} parent=0 // pred_check
    _
  $region19: #{rnn_classifier_forward.1} parent=0 // pred_check_branch
    %20 = sbr.rel (0) target = $region21
  $region20: #{rnn_classifier_forward.1} parent=0 // pred_region
    _
  $region21: #{rnn_classifier_forward.1} parent=0 // pred_fallthru
    _
  // Predicated region
  $region22: #{rnn_classifier_forward.1} parent=0 // pred_check
    _
  $region23: #{rnn_classifier_forward.1} parent=0 // pred_check_branch
    %22 = sbr.rel (0) target = $region25
  $region24: #{rnn_classifier_forward.1} parent=0 // pred_region
    _
  $region25: #{rnn_classifier_forward.1} parent=0 // pred_fallthru
    _
  %v23 = vld [vmem:[%s1] sm:$0xff]
  %v24 = vld [vmem:[%s1 + $0x8] sm:$0xff]
  %v25 = vld [vmem:[%s2] sm:$0xff]
  %v26 = vld [vmem:[%s2 + $0x8] sm:$0xff]
  %v27 = vld [vmem:[%s2 + $0x10] sm:$0xff]
  %v28 = vld [vmem:[%s2 + $0x18] sm:$0xff]
  %v29 = vld [vmem:[%s2 + $0x20] sm:$0xff]
  %v30 = vld [vmem:[%s2 + $0x28] sm:$0xff]
  %v31 = vld [vmem:[%s2 + $0x30] sm:$0xff]
  %v32 = vld [vmem:[%s2 + $0x38] sm:$0xff]
  %v33 = vld [vmem:[%s4] sm:$0xff]
  %v34 = vld [vmem:[%s4 + $0x8] sm:$0xff]
  %v35 = vld [vmem:[%s4 + $0x10] sm:$0xff]
  %v36 = vld [vmem:[%s4 + $0x18] sm:$0xff]
  %v37 = vld [vmem:[%s4 + $0x20] sm:$0xff]
  %v38 = vld [vmem:[%s4 + $0x28] sm:$0xff]
  %v39 = vld [vmem:[%s4 + $0x30] sm:$0xff]
  %v40 = vld [vmem:[%s4 + $0x38] sm:$0xff]
  %v41 = vld [vmem:[%s3] sm:$0x1]
  %v43 = vlaneseq
  %v44 = vshrl.u32 %v43, 7
  %v45 = vsub.s32 0, %v44
  %v46 = vrot.slane %v41, %v45
  %v48 = vld [vmem:[%s5] sm:$0x1]
  %v50 = vlaneseq
  %v51 = vshrl.u32 %v50, 7
  %v52 = vsub.s32 0, %v51
  %v53 = vrot.slane %v48, %v52
  %v55 = vld [vmem:[%s0] sm:$0xff]
  %v56 = vld [vmem:[%s0 + $0x8] sm:$0xff]
  %v57 = vld [vmem:[%s0 + $0x10] sm:$0xff]
  %v58 = vld [vmem:[%s0 + $0x18] sm:$0xff]
  %v59 = vld [vmem:[%s0 + $0x20] sm:$0xff]
  %v60 = vld [vmem:[%s0 + $0x28] sm:$0xff]
  %v61 = vld [vmem:[%s0 + $0x30] sm:$0xff]
  %v62 = vld [vmem:[%s0 + $0x38] sm:$0xff]
  %v63 = vld [vmem:[%s0 + $0x40] sm:$0xff]
  %v64 = vld [vmem:[%s0 + $0x48] sm:$0xff]
  %v65 = vld [vmem:[%s0 + $0x50] sm:$0xff]
  %v66 = vld [vmem:[%s0 + $0x58] sm:$0xff]
  %v67 = vld [vmem:[%s0 + $0x60] sm:$0xff]
  %v68 = vld [vmem:[%s0 + $0x68] sm:$0xff]
  %v69 = vld [vmem:[%s0 + $0x70] sm:$0xff]
  %v70 = vld [vmem:[%s0 + $0x78] sm:$0xff]
  %v71 = vld [vmem:[%s0 + $0x80] sm:$0xff]
  %v72 = vld [vmem:[%s0 + $0x88] sm:$0xff]
  %v73 = vld [vmem:[%s0 + $0x90] sm:$0xff]
  %v74 = vld [vmem:[%s0 + $0x98] sm:$0xff]
  %v75 = vld [vmem:[%s0 + $0xa0] sm:$0xff]
  %v76 = vld [vmem:[%s0 + $0xa8] sm:$0xff]
  %v77 = vld [vmem:[%s0 + $0xb0] sm:$0xff]
  %v78 = vld [vmem:[%s0 + $0xb8] sm:$0xff]
  %v79 = vld [vmem:[%s0 + $0xc0] sm:$0xff]
  %v80 = vld [vmem:[%s0 + $0xc8] sm:$0xff]
  %v81 = vld [vmem:[%s0 + $0xd0] sm:$0xff]
  %v82 = vld [vmem:[%s0 + $0xd8] sm:$0xff]
  %v83 = vld [vmem:[%s0 + $0xe0] sm:$0xff]
  %v84 = vld [vmem:[%s0 + $0xe8] sm:$0xff]
  %v85 = vld [vmem:[%s0 + $0xf0] sm:$0xff]
  %v86 = vld [vmem:[%s0 + $0xf8] sm:$0xff]
  %v87 = vld [vmem:[%s0 + $0x100] sm:$0xff]
  %v88 = vld [vmem:[%s0 + $0x108] sm:$0xff]
  %v89 = vld [vmem:[%s0 + $0x110] sm:$0xff]
  %v90 = vld [vmem:[%s0 + $0x118] sm:$0xff]
  %v91 = vld [vmem:[%s0 + $0x120] sm:$0xff]
  %v92 = vld [vmem:[%s0 + $0x128] sm:$0xff]
  %v93 = vld [vmem:[%s0 + $0x130] sm:$0xff]
  %v94 = vld [vmem:[%s0 + $0x138] sm:$0xff]
  %v95 = vld [vmem:[%s0 + $0x140] sm:$0xff]
  %v96 = vld [vmem:[%s0 + $0x148] sm:$0xff]
  %v97 = vld [vmem:[%s0 + $0x150] sm:$0xff]
  %v98 = vld [vmem:[%s0 + $0x158] sm:$0xff]
  %v99 = vld [vmem:[%s0 + $0x160] sm:$0xff]
  %v100 = vld [vmem:[%s0 + $0x168] sm:$0xff]
  %v101 = vld [vmem:[%s0 + $0x170] sm:$0xff]
  %v102 = vld [vmem:[%s0 + $0x178] sm:$0xff]
  %v103 = vld [vmem:[%s0 + $0x180] sm:$0xff]
  %v104 = vld [vmem:[%s0 + $0x188] sm:$0xff]
  %v105 = vld [vmem:[%s0 + $0x190] sm:$0xff]
  %v106 = vld [vmem:[%s0 + $0x198] sm:$0xff]
  %v107 = vld [vmem:[%s0 + $0x1a0] sm:$0xff]
  %v108 = vld [vmem:[%s0 + $0x1a8] sm:$0xff]
  %v109 = vld [vmem:[%s0 + $0x1b0] sm:$0xff]
  %v110 = vld [vmem:[%s0 + $0x1b8] sm:$0xff]
  %v111 = vld [vmem:[%s0 + $0x1c0] sm:$0xff]
  %v112 = vld [vmem:[%s0 + $0x1c8] sm:$0xff]
  %v113 = vld [vmem:[%s0 + $0x1d0] sm:$0xff]
  %v114 = vld [vmem:[%s0 + $0x1d8] sm:$0xff]
  %v115 = vld [vmem:[%s0 + $0x1e0] sm:$0xff]
  %v116 = vld [vmem:[%s0 + $0x1e8] sm:$0xff]
  %v117 = vld [vmem:[%s0 + $0x1f0] sm:$0xff]
  %v118 = vld [vmem:[%s0 + $0x1f8] sm:$0xff]
  %vm119 = vcmask 130048
  %v121 = vsel %vm119, %v55, 0
  %v124 = vsel %vm119, %v56, 0
  %v127 = vsel %vm119, %v57, 0
  %v130 = vsel %vm119, %v58, 0
  %v133 = vsel %vm119, %v59, 0
  %v136 = vsel %vm119, %v60, 0
  %v139 = vsel %vm119, %v61, 0
  %v142 = vsel %vm119, %v62, 0
  %v145 = vsel %vm119, %v63, 0
  %v148 = vsel %vm119, %v64, 0
  %v151 = vsel %vm119, %v65, 0
  %v154 = vsel %vm119, %v66, 0
  %v157 = vsel %vm119, %v67, 0
  %v160 = vsel %vm119, %v68, 0
  %v163 = vsel %vm119, %v69, 0
  %v166 = vsel %vm119, %v70, 0
  %v169 = vsel %vm119, %v71, 0
  %v172 = vsel %vm119, %v72, 0
  %v175 = vsel %vm119, %v73, 0
  %v178 = vsel %vm119, %v74, 0
  %v181 = vsel %vm119, %v75, 0
  %v184 = vsel %vm119, %v76, 0
  %v187 = vsel %vm119, %v77, 0
  %v190 = vsel %vm119, %v78, 0
  %v193 = vsel %vm119, %v79, 0
  %v196 = vsel %vm119, %v80, 0
  %v199 = vsel %vm119, %v81, 0
  %v202 = vsel %vm119, %v82, 0
  %v205 = vsel %vm119, %v83, 0
  %v208 = vsel %vm119, %v84, 0
  %v211 = vsel %vm119, %v85, 0
  %v214 = vsel %vm119, %v86, 0
  %v217 = vsel %vm119, %v87, 0
  %v220 = vsel %vm119, %v88, 0
  %v223 = vsel %vm119, %v89, 0
  %v226 = vsel %vm119, %v90, 0
  %v229 = vsel %vm119, %v91, 0
  %v232 = vsel %vm119, %v92, 0
  %v235 = vsel %vm119, %v93, 0
  %v238 = vsel %vm119, %v94, 0
  %v241 = vsel %vm119, %v95, 0
  %v244 = vsel %vm119, %v96, 0
  %v247 = vsel %vm119, %v97, 0
  %v250 = vsel %vm119, %v98, 0
  %v253 = vsel %vm119, %v99, 0
  %v256 = vsel %vm119, %v100, 0
  %v259 = vsel %vm119, %v101, 0
  %v262 = vsel %vm119, %v102, 0
  %v265 = vsel %vm119, %v103, 0
  %v268 = vsel %vm119, %v104, 0
  %v271 = vsel %vm119, %v105, 0
  %v274 = vsel %vm119, %v106, 0
  %v277 = vsel %vm119, %v107, 0
  %v280 = vsel %vm119, %v108, 0
  %v283 = vsel %vm119, %v109, 0
  %v286 = vsel %vm119, %v110, 0
  %v289 = vsel %vm119, %v111, 0
  %v292 = vsel %vm119, %v112, 0
  %v295 = vsel %vm119, %v113, 0
  %v298 = vsel %vm119, %v114, 0
  %v301 = vsel %vm119, %v115, 0
  %v304 = vsel %vm119, %v116, 0
  %v307 = vsel %vm119, %v117, 0
  %v310 = vsel %vm119, %v118, 0
  %312 = vmatprep.subr.mxu0 0.0
  %313 = vmatpush1.msra.mxu0 0.0
  %314 = vmatprep.subr.mxu0 0.0
  %315 = vmatpush1.msra.mxu0 0.0
  %316 = vmatprep.subr.mxu0 0.0
  %317 = vmatpush1.msra.mxu0 0.0
  %318 = vmatprep.subr.mxu0 0.0
  %319 = vmatpush1.msra.mxu0 0.0
  %320 = vmatprep.subr.mxu0 0.0
  %321 = vmatpush1.msra.mxu0 0.0
  %322 = vmatprep.subr.mxu0 0.0
  %323 = vmatpush1.msra.mxu0 0.0
  %324 = vmatprep.subr.mxu0 0.0
  %325 = vmatpush1.msra.mxu0 0.0
  %326 = vmatprep.subr.mxu0 0.0
  %327 = vmatpush1.msra.mxu0 0.0
  %328 = vmatprep.subr.mxu0 0.0
  %329 = vmatpush1.msra.mxu0 0.0
  %330 = vmatprep.subr.mxu0 0.0
  %331 = vmatpush1.msra.mxu0 0.0
  %332 = vmatprep.subr.mxu0 0.0
  %333 = vmatpush1.msra.mxu0 0.0
  %334 = vmatprep.subr.mxu0 0.0
  %335 = vmatpush1.msra.mxu0 0.0
  %336 = vmatprep.subr.mxu0 0.0
  %337 = vmatpush1.msra.mxu0 0.0
  %338 = vmatprep.subr.mxu0 0.0
  %339 = vmatpush1.msra.mxu0 0.0
  %340 = vmatprep.subr.mxu0 0.0
  %341 = vmatpush1.msra.mxu0 %v24
  %342 = vmatprep.subr.mxu0 0.0
  %343 = vmatpush1.msra.mxu0 %v23
  %344 = vmatprep.subr.mxu0 0.0
  %345 = vmatpush2.msra.mxu0 0.0
  %346 = vmatprep.subr.mxu0 0.0
  %347 = vmatpush2.msra.mxu0 0.0
  %348 = vmatprep.subr.mxu0 0.0
  %349 = vmatpush2.msra.mxu0 0.0
  %350 = vmatprep.subr.mxu0 0.0
  %351 = vmatpush2.msra.mxu0 0.0
  %352 = vmatprep.subr.mxu0 0.0
  %353 = vmatpush2.msra.mxu0 0.0
  %354 = vmatprep.subr.mxu0 0.0
  %355 = vmatpush2.msra.mxu0 0.0
  %356 = vmatprep.subr.mxu0 0.0
  %357 = vmatpush2.msra.mxu0 0.0
  %358 = vmatprep.subr.mxu0 0.0
  %359 = vmatpush2.msra.mxu0 0.0
  %360 = vmatprep.subr.mxu0 0.0
  %361 = vmatpush2.msra.mxu0 0.0
  %362 = vmatprep.subr.mxu0 0.0
  %363 = vmatpush2.msra.mxu0 0.0
  %364 = vmatprep.subr.mxu0 0.0
  %365 = vmatpush2.msra.mxu0 0.0
  %366 = vmatprep.subr.mxu0 0.0
  %367 = vmatpush2.msra.mxu0 0.0
  %368 = vmatprep.subr.mxu0 0.0
  %369 = vmatpush2.msra.mxu0 0.0
  %370 = vmatprep.subr.mxu0 0.0
  %371 = vmatpush2.msra.mxu0 0.0
  %372 = vmatprep.subr.mxu0 0.0
  %373 = vmatpush2.msra.mxu0 0.0
  %374 = vmatprep.subr.mxu0 0.0
  %375 = vmatpush2.msra.mxu0 0.0
  %376 = vmatprep.mubr.f32.mxu0 0.0
  %377 = vmatmul.mubr.f32.gmra.mxu0 %v121
  %v378 = vpop.f32.mrf.mxu0
  %v379 = vadd.f32 %v46, %v378
  %v380 = vpop.f32.mrf.mxu0
  %381 = vmatprep.mubr.f32.mxu0 0.0
  %382 = vmatmul.mubr.f32.gmra.mxu0 %v124
  %v383 = vpop.f32.mrf.mxu0
  %v384 = vadd.f32 %v46, %v383
  %v385 = vpop.f32.mrf.mxu0
  %386 = vmatprep.mubr.f32.mxu0 0.0
  %387 = vmatmul.mubr.f32.gmra.mxu0 %v127
  %v388 = vpop.f32.mrf.mxu0
  %v389 = vadd.f32 %v46, %v388
  %v390 = vpop.f32.mrf.mxu0
  %391 = vmatprep.mubr.f32.mxu0 0.0
  %392 = vmatmul.mubr.f32.gmra.mxu0 %v130
  %v393 = vpop.f32.mrf.mxu0
  %v394 = vadd.f32 %v46, %v393
  %v395 = vpop.f32.mrf.mxu0
  %396 = vmatprep.mubr.f32.mxu0 0.0
  %397 = vmatmul.mubr.f32.gmra.mxu0 %v133
  %v398 = vpop.f32.mrf.mxu0
  %v399 = vadd.f32 %v46, %v398
  %v400 = vpop.f32.mrf.mxu0
  %401 = vmatprep.mubr.f32.mxu0 0.0
  %402 = vmatmul.mubr.f32.gmra.mxu0 %v136
  %v403 = vpop.f32.mrf.mxu0
  %v404 = vadd.f32 %v46, %v403
  %v405 = vpop.f32.mrf.mxu0
  %406 = vmatprep.mubr.f32.mxu0 0.0
  %407 = vmatmul.mubr.f32.gmra.mxu0 %v139
  %v408 = vpop.f32.mrf.mxu0
  %v409 = vadd.f32 %v46, %v408
  %v410 = vpop.f32.mrf.mxu0
  %411 = vmatprep.mubr.f32.mxu0 0.0
  %412 = vmatmul.mubr.f32.gmra.mxu0 %v142
  %v413 = vpop.f32.mrf.mxu0
  %v414 = vadd.f32 %v46, %v413
  %v415 = vpop.f32.mrf.mxu0
  %416 = vmatprep.mubr.f32.mxu0 0.0
  %417 = vmatmul.mubr.f32.gmra.mxu0 %v145
  %v418 = vpop.f32.mrf.mxu0
  %v419 = vadd.f32 %v46, %v418
  %v420 = vpop.f32.mrf.mxu0
  %421 = vmatprep.mubr.f32.mxu0 0.0
  %422 = vmatmul.mubr.f32.gmra.mxu0 %v148
  %v423 = vpop.f32.mrf.mxu0
  %v424 = vadd.f32 %v46, %v423
  %v425 = vpop.f32.mrf.mxu0
  %426 = vmatprep.mubr.f32.mxu0 0.0
  %427 = vmatmul.mubr.f32.gmra.mxu0 %v151
  %v428 = vpop.f32.mrf.mxu0
  %v429 = vadd.f32 %v46, %v428
  %v430 = vpop.f32.mrf.mxu0
  %431 = vmatprep.mubr.f32.mxu0 0.0
  %432 = vmatmul.mubr.f32.gmra.mxu0 %v154
  %v433 = vpop.f32.mrf.mxu0
  %v434 = vadd.f32 %v46, %v433
  %v435 = vpop.f32.mrf.mxu0
  %436 = vmatprep.mubr.f32.mxu0 0.0
  %437 = vmatmul.mubr.f32.gmra.mxu0 %v157
  %v438 = vpop.f32.mrf.mxu0
  %v439 = vadd.f32 %v46, %v438
  %v440 = vpop.f32.mrf.mxu0
  %441 = vmatprep.mubr.f32.mxu0 0.0
  %442 = vmatmul.mubr.f32.gmra.mxu0 %v160
  %v443 = vpop.f32.mrf.mxu0
  %v444 = vadd.f32 %v46, %v443
  %v445 = vpop.f32.mrf.mxu0
  %446 = vmatprep.mubr.f32.mxu0 0.0
  %447 = vmatmul.mubr.f32.gmra.mxu0 %v163
  %v448 = vpop.f32.mrf.mxu0
  %v449 = vadd.f32 %v46, %v448
  %v450 = vpop.f32.mrf.mxu0
  %451 = vmatprep.mubr.f32.mxu0 0.0
  %452 = vmatmul.mubr.f32.gmra.mxu0 %v166
  %v453 = vpop.f32.mrf.mxu0
  %v454 = vadd.f32 %v46, %v453
  %v455 = vpop.f32.mrf.mxu0
  %456 = vmatprep.mubr.f32.mxu0 0.0
  %457 = vmatmul.mubr.f32.gmra.mxu0 %v169
  %v458 = vpop.f32.mrf.mxu0
  %v459 = vadd.f32 %v46, %v458
  %v460 = vpop.f32.mrf.mxu0
  %461 = vmatprep.mubr.f32.mxu0 0.0
  %462 = vmatmul.mubr.f32.gmra.mxu0 %v172
  %v463 = vpop.f32.mrf.mxu0
  %v464 = vadd.f32 %v46, %v463
  %v465 = vpop.f32.mrf.mxu0
  %466 = vmatprep.mubr.f32.mxu0 0.0
  %467 = vmatmul.mubr.f32.gmra.mxu0 %v175
  %v468 = vpop.f32.mrf.mxu0
  %v469 = vadd.f32 %v46, %v468
  %v470 = vpop.f32.mrf.mxu0
  %471 = vmatprep.mubr.f32.mxu0 0.0
  %472 = vmatmul.mubr.f32.gmra.mxu0 %v178
  %v473 = vpop.f32.mrf.mxu0
  %v474 = vadd.f32 %v46, %v473
  %v475 = vpop.f32.mrf.mxu0
  %476 = vmatprep.mubr.f32.mxu0 0.0
  %477 = vmatmul.mubr.f32.gmra.mxu0 %v181
  %v478 = vpop.f32.mrf.mxu0
  %v479 = vadd.f32 %v46, %v478
  %v480 = vpop.f32.mrf.mxu0
  %481 = vmatprep.mubr.f32.mxu0 0.0
  %482 = vmatmul.mubr.f32.gmra.mxu0 %v184
  %v483 = vpop.f32.mrf.mxu0
  %v484 = vadd.f32 %v46, %v483
  %v485 = vpop.f32.mrf.mxu0
  %486 = vmatprep.mubr.f32.mxu0 0.0
  %487 = vmatmul.mubr.f32.gmra.mxu0 %v187
  %v488 = vpop.f32.mrf.mxu0
  %v489 = vadd.f32 %v46, %v488
  %v490 = vpop.f32.mrf.mxu0
  %491 = vmatprep.mubr.f32.mxu0 0.0
  %492 = vmatmul.mubr.f32.gmra.mxu0 %v190
  %v493 = vpop.f32.mrf.mxu0
  %v494 = vadd.f32 %v46, %v493
  %v495 = vpop.f32.mrf.mxu0
  %496 = vmatprep.mubr.f32.mxu0 0.0
  %497 = vmatmul.mubr.f32.gmra.mxu0 %v193
  %v498 = vpop.f32.mrf.mxu0
  %v499 = vadd.f32 %v46, %v498
  %v500 = vpop.f32.mrf.mxu0
  %501 = vmatprep.mubr.f32.mxu0 0.0
  %502 = vmatmul.mubr.f32.gmra.mxu0 %v196
  %v503 = vpop.f32.mrf.mxu0
  %v504 = vadd.f32 %v46, %v503
  %v505 = vpop.f32.mrf.mxu0
  %506 = vmatprep.mubr.f32.mxu0 0.0
  %507 = vmatmul.mubr.f32.gmra.mxu0 %v199
  %v508 = vpop.f32.mrf.mxu0
  %v509 = vadd.f32 %v46, %v508
  %v510 = vpop.f32.mrf.mxu0
  %511 = vmatprep.mubr.f32.mxu0 0.0
  %512 = vmatmul.mubr.f32.gmra.mxu0 %v202
  %v513 = vpop.f32.mrf.mxu0
  %v514 = vadd.f32 %v46, %v513
  %v515 = vpop.f32.mrf.mxu0
  %516 = vmatprep.mubr.f32.mxu0 0.0
  %517 = vmatmul.mubr.f32.gmra.mxu0 %v205
  %v518 = vpop.f32.mrf.mxu0
  %v519 = vadd.f32 %v46, %v518
  %v520 = vpop.f32.mrf.mxu0
  %521 = vmatprep.mubr.f32.mxu0 0.0
  %522 = vmatmul.mubr.f32.gmra.mxu0 %v208
  %v523 = vpop.f32.mrf.mxu0
  %v524 = vadd.f32 %v46, %v523
  %v525 = vpop.f32.mrf.mxu0
  %526 = vmatprep.mubr.f32.mxu0 0.0
  %527 = vmatmul.mubr.f32.gmra.mxu0 %v211
  %v528 = vpop.f32.mrf.mxu0
  %v529 = vadd.f32 %v46, %v528
  %v530 = vpop.f32.mrf.mxu0
  %531 = vmatprep.mubr.f32.mxu0 0.0
  %532 = vmatmul.mubr.f32.gmra.mxu0 %v214
  %v533 = vpop.f32.mrf.mxu0
  %v534 = vadd.f32 %v46, %v533
  %v535 = vpop.f32.mrf.mxu0
  %536 = vmatprep.mubr.f32.mxu0 0.0
  %537 = vmatmul.mubr.f32.gmra.mxu0 %v217
  %v538 = vpop.f32.mrf.mxu0
  %v539 = vadd.f32 %v46, %v538
  %v540 = vpop.f32.mrf.mxu0
  %541 = vmatprep.mubr.f32.mxu0 0.0
  %542 = vmatmul.mubr.f32.gmra.mxu0 %v220
  %v543 = vpop.f32.mrf.mxu0
  %v544 = vadd.f32 %v46, %v543
  %v545 = vpop.f32.mrf.mxu0
  %546 = vmatprep.mubr.f32.mxu0 0.0
  %547 = vmatmul.mubr.f32.gmra.mxu0 %v223
  %v548 = vpop.f32.mrf.mxu0
  %v549 = vadd.f32 %v46, %v548
  %v550 = vpop.f32.mrf.mxu0
  %551 = vmatprep.mubr.f32.mxu0 0.0
  %552 = vmatmul.mubr.f32.gmra.mxu0 %v226
  %v553 = vpop.f32.mrf.mxu0
  %v554 = vadd.f32 %v46, %v553
  %v555 = vpop.f32.mrf.mxu0
  %556 = vmatprep.mubr.f32.mxu0 0.0
  %557 = vmatmul.mubr.f32.gmra.mxu0 %v229
  %v558 = vpop.f32.mrf.mxu0
  %v559 = vadd.f32 %v46, %v558
  %v560 = vpop.f32.mrf.mxu0
  %561 = vmatprep.mubr.f32.mxu0 0.0
  %562 = vmatmul.mubr.f32.gmra.mxu0 %v232
  %v563 = vpop.f32.mrf.mxu0
  %v564 = vadd.f32 %v46, %v563
  %v565 = vpop.f32.mrf.mxu0
  %566 = vmatprep.mubr.f32.mxu0 0.0
  %567 = vmatmul.mubr.f32.gmra.mxu0 %v235
  %v568 = vpop.f32.mrf.mxu0
  %v569 = vadd.f32 %v46, %v568
  %v570 = vpop.f32.mrf.mxu0
  %571 = vmatprep.mubr.f32.mxu0 0.0
  %572 = vmatmul.mubr.f32.gmra.mxu0 %v238
  %v573 = vpop.f32.mrf.mxu0
  %v574 = vadd.f32 %v46, %v573
  %v575 = vpop.f32.mrf.mxu0
  %576 = vmatprep.mubr.f32.mxu0 0.0
  %577 = vmatmul.mubr.f32.gmra.mxu0 %v241
  %v578 = vpop.f32.mrf.mxu0
  %v579 = vadd.f32 %v46, %v578
  %v580 = vpop.f32.mrf.mxu0
  %581 = vmatprep.mubr.f32.mxu0 0.0
  %582 = vmatmul.mubr.f32.gmra.mxu0 %v244
  %v583 = vpop.f32.mrf.mxu0
  %v584 = vadd.f32 %v46, %v583
  %v585 = vpop.f32.mrf.mxu0
  %586 = vmatprep.mubr.f32.mxu0 0.0
  %587 = vmatmul.mubr.f32.gmra.mxu0 %v247
  %v588 = vpop.f32.mrf.mxu0
  %v589 = vadd.f32 %v46, %v588
  %v590 = vpop.f32.mrf.mxu0
  %591 = vmatprep.mubr.f32.mxu0 0.0
  %592 = vmatmul.mubr.f32.gmra.mxu0 %v250
  %v593 = vpop.f32.mrf.mxu0
  %v594 = vadd.f32 %v46, %v593
  %v595 = vpop.f32.mrf.mxu0
  %596 = vmatprep.mubr.f32.mxu0 0.0
  %597 = vmatmul.mubr.f32.gmra.mxu0 %v253
  %v598 = vpop.f32.mrf.mxu0
  %v599 = vadd.f32 %v46, %v598
  %v600 = vpop.f32.mrf.mxu0
  %601 = vmatprep.mubr.f32.mxu0 0.0
  %602 = vmatmul.mubr.f32.gmra.mxu0 %v256
  %v603 = vpop.f32.mrf.mxu0
  %v604 = vadd.f32 %v46, %v603
  %v605 = vpop.f32.mrf.mxu0
  %606 = vmatprep.mubr.f32.mxu0 0.0
  %607 = vmatmul.mubr.f32.gmra.mxu0 %v259
  %v608 = vpop.f32.mrf.mxu0
  %v609 = vadd.f32 %v46, %v608
  %v610 = vpop.f32.mrf.mxu0
  %611 = vmatprep.mubr.f32.mxu0 0.0
  %612 = vmatmul.mubr.f32.gmra.mxu0 %v262
  %v613 = vpop.f32.mrf.mxu0
  %v614 = vadd.f32 %v46, %v613
  %v615 = vpop.f32.mrf.mxu0
  %616 = vmatprep.mubr.f32.mxu0 0.0
  %617 = vmatmul.mubr.f32.gmra.mxu0 %v265
  %v618 = vpop.f32.mrf.mxu0
  %v619 = vadd.f32 %v46, %v618
  %v620 = vpop.f32.mrf.mxu0
  %621 = vmatprep.mubr.f32.mxu0 0.0
  %622 = vmatmul.mubr.f32.gmra.mxu0 %v268
  %v623 = vpop.f32.mrf.mxu0
  %v624 = vadd.f32 %v46, %v623
  %v625 = vpop.f32.mrf.mxu0
  %626 = vmatprep.mubr.f32.mxu0 0.0
  %627 = vmatmul.mubr.f32.gmra.mxu0 %v271
  %v628 = vpop.f32.mrf.mxu0
  %v629 = vadd.f32 %v46, %v628
  %v630 = vpop.f32.mrf.mxu0
  %631 = vmatprep.mubr.f32.mxu0 0.0
  %632 = vmatmul.mubr.f32.gmra.mxu0 %v274
  %v633 = vpop.f32.mrf.mxu0
  %v634 = vadd.f32 %v46, %v633
  %v635 = vpop.f32.mrf.mxu0
  %636 = vmatprep.mubr.f32.mxu0 0.0
  %637 = vmatmul.mubr.f32.gmra.mxu0 %v277
  %v638 = vpop.f32.mrf.mxu0
  %v639 = vadd.f32 %v46, %v638
  %v640 = vpop.f32.mrf.mxu0
  %641 = vmatprep.mubr.f32.mxu0 0.0
  %642 = vmatmul.mubr.f32.gmra.mxu0 %v280
  %v643 = vpop.f32.mrf.mxu0
  %v644 = vadd.f32 %v46, %v643
  %v645 = vpop.f32.mrf.mxu0
  %646 = vmatprep.mubr.f32.mxu0 0.0
  %647 = vmatmul.mubr.f32.gmra.mxu0 %v283
  %v648 = vpop.f32.mrf.mxu0
  %v649 = vadd.f32 %v46, %v648
  %v650 = vpop.f32.mrf.mxu0
  %651 = vmatprep.mubr.f32.mxu0 0.0
  %652 = vmatmul.mubr.f32.gmra.mxu0 %v286
  %v653 = vpop.f32.mrf.mxu0
  %v654 = vadd.f32 %v46, %v653
  %v655 = vpop.f32.mrf.mxu0
  %656 = vmatprep.mubr.f32.mxu0 0.0
  %657 = vmatmul.mubr.f32.gmra.mxu0 %v289
  %v658 = vpop.f32.mrf.mxu0
  %v659 = vadd.f32 %v46, %v658
  %v660 = vpop.f32.mrf.mxu0
  %661 = vmatprep.mubr.f32.mxu0 0.0
  %662 = vmatmul.mubr.f32.gmra.mxu0 %v292
  %v663 = vpop.f32.mrf.mxu0
  %v664 = vadd.f32 %v46, %v663
  %v665 = vpop.f32.mrf.mxu0
  %666 = vmatprep.mubr.f32.mxu0 0.0
  %667 = vmatmul.mubr.f32.gmra.mxu0 %v295
  %v668 = vpop.f32.mrf.mxu0
  %v669 = vadd.f32 %v46, %v668
  %v670 = vpop.f32.mrf.mxu0
  %671 = vmatprep.mubr.f32.mxu0 0.0
  %672 = vmatmul.mubr.f32.gmra.mxu0 %v298
  %v673 = vpop.f32.mrf.mxu0
  %v674 = vadd.f32 %v46, %v673
  %v675 = vpop.f32.mrf.mxu0
  %676 = vmatprep.mubr.f32.mxu0 0.0
  %677 = vmatmul.mubr.f32.gmra.mxu0 %v301
  %v678 = vpop.f32.mrf.mxu0
  %v679 = vadd.f32 %v46, %v678
  %v680 = vpop.f32.mrf.mxu0
  %681 = vmatprep.mubr.f32.mxu0 0.0
  %682 = vmatmul.mubr.f32.gmra.mxu0 %v304
  %v683 = vpop.f32.mrf.mxu0
  %v684 = vadd.f32 %v46, %v683
  %v685 = vpop.f32.mrf.mxu0
  %686 = vmatprep.mubr.f32.mxu0 0.0
  %687 = vmatmul.mubr.f32.gmra.mxu0 %v307
  %v688 = vpop.f32.mrf.mxu0
  %v689 = vadd.f32 %v46, %v688
  %v690 = vpop.f32.mrf.mxu0
  %691 = vmatprep.mubr.f32.mxu0 0.0
  %692 = vmatmul.mubr.f32.gmra.mxu0 %v310
  %v693 = vpop.f32.mrf.mxu0
  %v694 = vadd.f32 %v46, %v693
  %v695 = vpop.f32.mrf.mxu0
  %696 = vdwg.mxu0
  %vm697 = vcmask 523264
  %v699 = vsel %vm697, 0.0, 0
  %701 = vmatprep.subr.mxu0 0.0
  %702 = vmatpush1.msra.mxu0 0.0
  %703 = vmatprep.subr.mxu0 0.0
  %704 = vmatpush1.msra.mxu0 0.0
  %705 = vmatprep.subr.mxu0 0.0
  %706 = vmatpush1.msra.mxu0 0.0
  %707 = vmatprep.subr.mxu0 0.0
  %708 = vmatpush1.msra.mxu0 0.0
  %709 = vmatprep.subr.mxu0 0.0
  %710 = vmatpush1.msra.mxu0 0.0
  %711 = vmatprep.subr.mxu0 0.0
  %712 = vmatpush1.msra.mxu0 0.0
  %713 = vmatprep.subr.mxu0 0.0
  %714 = vmatpush1.msra.mxu0 0.0
  %715 = vmatprep.subr.mxu0 0.0
  %716 = vmatpush1.msra.mxu0 0.0
  %717 = vmatprep.subr.mxu0 0.0
  %718 = vmatpush1.msra.mxu0 %v32
  %719 = vmatprep.subr.mxu0 0.0
  %720 = vmatpush1.msra.mxu0 %v31
  %721 = vmatprep.subr.mxu0 0.0
  %722 = vmatpush1.msra.mxu0 %v30
  %723 = vmatprep.subr.mxu0 0.0
  %724 = vmatpush1.msra.mxu0 %v29
  %725 = vmatprep.subr.mxu0 0.0
  %726 = vmatpush1.msra.mxu0 %v28
  %727 = vmatprep.subr.mxu0 0.0
  %728 = vmatpush1.msra.mxu0 %v27
  %729 = vmatprep.subr.mxu0 0.0
  %730 = vmatpush1.msra.mxu0 %v26
  %731 = vmatprep.subr.mxu0 0.0
  %732 = vmatpush1.msra.mxu0 %v25
  %733 = vmatprep.subr.mxu0 0.0
  %734 = vmatpush2.msra.mxu0 0.0
  %735 = vmatprep.subr.mxu0 0.0
  %736 = vmatpush2.msra.mxu0 0.0
  %737 = vmatprep.subr.mxu0 0.0
  %738 = vmatpush2.msra.mxu0 0.0
  %739 = vmatprep.subr.mxu0 0.0
  %740 = vmatpush2.msra.mxu0 0.0
  %741 = vmatprep.subr.mxu0 0.0
  %742 = vmatpush2.msra.mxu0 0.0
  %743 = vmatprep.subr.mxu0 0.0
  %744 = vmatpush2.msra.mxu0 0.0
  %745 = vmatprep.subr.mxu0 0.0
  %746 = vmatpush2.msra.mxu0 0.0
  %747 = vmatprep.subr.mxu0 0.0
  %748 = vmatpush2.msra.mxu0 0.0
  %749 = vmatprep.subr.mxu0 0.0
  %750 = vmatpush2.msra.mxu0 0.0
  %751 = vmatprep.subr.mxu0 0.0
  %752 = vmatpush2.msra.mxu0 0.0
  %753 = vmatprep.subr.mxu0 0.0
  %754 = vmatpush2.msra.mxu0 0.0
  %755 = vmatprep.subr.mxu0 0.0
  %756 = vmatpush2.msra.mxu0 0.0
  %757 = vmatprep.subr.mxu0 0.0
  %758 = vmatpush2.msra.mxu0 0.0
  %759 = vmatprep.subr.mxu0 0.0
  %760 = vmatpush2.msra.mxu0 0.0
  %761 = vmatprep.subr.mxu0 0.0
  %762 = vmatpush2.msra.mxu0 0.0
  %763 = vmatprep.subr.mxu0 0.0
  %764 = vmatpush2.msra.mxu0 0.0
  %765 = vmatprep.mubr.f32.mxu0 0.0
  %766 = vmatmul.mubr.f32.gmra.mxu0 %v699
  %v767 = vpop.f32.mrf.mxu0
  %v768 = vadd.f32 0.0, %v767
  %v769 = vpop.f32.mrf.mxu0
  %770 = vmatprep.mubr.f32.mxu0 0.0
  %771 = vmatmul.mubr.f32.gmra.mxu0 %v699
  %v772 = vpop.f32.mrf.mxu0
  %v773 = vadd.f32 0.0, %v772
  %v774 = vpop.f32.mrf.mxu0
  %775 = vmatprep.mubr.f32.mxu0 0.0
  %776 = vmatmul.mubr.f32.gmra.mxu0 %v699
  %v777 = vpop.f32.mrf.mxu0
  %v778 = vadd.f32 0.0, %v777
  %v779 = vpop.f32.mrf.mxu0
  %780 = vmatprep.mubr.f32.mxu0 0.0
  %781 = vmatmul.mubr.f32.gmra.mxu0 %v699
  %v782 = vpop.f32.mrf.mxu0
  %v783 = vadd.f32 0.0, %v782
  %v784 = vpop.f32.mrf.mxu0
  %785 = vmatprep.mubr.f32.mxu0 0.0
  %786 = vmatmul.mubr.f32.gmra.mxu0 %v699
  %v787 = vpop.f32.mrf.mxu0
  %v788 = vadd.f32 0.0, %v787
  %v789 = vpop.f32.mrf.mxu0
  %790 = vmatprep.mubr.f32.mxu0 0.0
  %791 = vmatmul.mubr.f32.gmra.mxu0 %v699
  %v792 = vpop.f32.mrf.mxu0
  %v793 = vadd.f32 0.0, %v792
  %v794 = vpop.f32.mrf.mxu0
  %795 = vmatprep.mubr.f32.mxu0 0.0
  %796 = vmatmul.mubr.f32.gmra.mxu0 %v699
  %v797 = vpop.f32.mrf.mxu0
  %v798 = vadd.f32 0.0, %v797
  %v799 = vpop.f32.mrf.mxu0
  %800 = vmatprep.mubr.f32.mxu0 0.0
  %801 = vmatmul.mubr.f32.gmra.mxu0 %v699
  %v802 = vpop.f32.mrf.mxu0
  %v803 = vadd.f32 0.0, %v802
  %v804 = vpop.f32.mrf.mxu0
  %805 = vdwg.mxu0
  %v806 = vadd.f32 %v379, %v768
  %v807 = vadd.f32 %v384, %v773
  %v808 = vadd.f32 %v389, %v778
  %v809 = vadd.f32 %v394, %v783
  %v810 = vadd.f32 %v399, %v788
  %v811 = vadd.f32 %v404, %v793
  %v812 = vadd.f32 %v409, %v798
  %v813 = vadd.f32 %v414, %v803
  %v814 = vtanh.pop %v806
  %v815 = vtanh.pop %v807
  %v816 = vtanh.pop %v808
  %v817 = vtanh.pop %v809
  %v818 = vtanh.pop %v810
  %v819 = vtanh.pop %v811
  %v820 = vtanh.pop %v812
  %v821 = vtanh.pop %v813
  %v823 = vsel %vm697, %v814, 0
  %v826 = vsel %vm697, %v815, 0
  %v829 = vsel %vm697, %v816, 0
  %v832 = vsel %vm697, %v817, 0
  %v835 = vsel %vm697, %v818, 0
  %v838 = vsel %vm697, %v819, 0
  %v841 = vsel %vm697, %v820, 0
  %v844 = vsel %vm697, %v821, 0
  %846 = vmatprep.subr.mxu0 0.0
  %847 = vmatpush1.msra.mxu0 0.0
  %848 = vmatprep.subr.mxu0 0.0
  %849 = vmatpush1.msra.mxu0 0.0
  %850 = vmatprep.subr.mxu0 0.0
  %851 = vmatpush1.msra.mxu0 0.0
  %852 = vmatprep.subr.mxu0 0.0
  %853 = vmatpush1.msra.mxu0 0.0
  %854 = vmatprep.subr.mxu0 0.0
  %855 = vmatpush1.msra.mxu0 0.0
  %856 = vmatprep.subr.mxu0 0.0
  %857 = vmatpush1.msra.mxu0 0.0
  %858 = vmatprep.subr.mxu0 0.0
  %859 = vmatpush1.msra.mxu0 0.0
  %860 = vmatprep.subr.mxu0 0.0
  %861 = vmatpush1.msra.mxu0 0.0
  %862 = vmatprep.subr.mxu0 0.0
  %863 = vmatpush1.msra.mxu0 %v32
  %864 = vmatprep.subr.mxu0 0.0
  %865 = vmatpush1.msra.mxu0 %v31
  %866 = vmatprep.subr.mxu0 0.0
  %867 = vmatpush1.msra.mxu0 %v30
  %868 = vmatprep.subr.mxu0 0.0
  %869 = vmatpush1.msra.mxu0 %v29
  %870 = vmatprep.subr.mxu0 0.0
  %871 = vmatpush1.msra.mxu0 %v28
  %872 = vmatprep.subr.mxu0 0.0
  %873 = vmatpush1.msra.mxu0 %v27
  %874 = vmatprep.subr.mxu0 0.0
  %875 = vmatpush1.msra.mxu0 %v26
  %876 = vmatprep.subr.mxu0 0.0
  %877 = vmatpush1.msra.mxu0 %v25
  %878 = vmatprep.subr.mxu0 0.0
  %879 = vmatpush2.msra.mxu0 0.0
  %880 = vmatprep.subr.mxu0 0.0
  %881 = vmatpush2.msra.mxu0 0.0
  %882 = vmatprep.subr.mxu0 0.0
  %883 = vmatpush2.msra.mxu0 0.0
  %884 = vmatprep.subr.mxu0 0.0
  %885 = vmatpush2.msra.mxu0 0.0
  %886 = vmatprep.subr.mxu0 0.0
  %887 = vmatpush2.msra.mxu0 0.0
  %888 = vmatprep.subr.mxu0 0.0
  %889 = vmatpush2.msra.mxu0 0.0
  %890 = vmatprep.subr.mxu0 0.0
  %891 = vmatpush2.msra.mxu0 0.0
  %892 = vmatprep.subr.mxu0 0.0
  %893 = vmatpush2.msra.mxu0 0.0
  %894 = vmatprep.subr.mxu0 0.0
  %895 = vmatpush2.msra.mxu0 0.0
  %896 = vmatprep.subr.mxu0 0.0
  %897 = vmatpush2.msra.mxu0 0.0
  %898 = vmatprep.subr.mxu0 0.0
  %899 = vmatpush2.msra.mxu0 0.0
  %900 = vmatprep.subr.mxu0 0.0
  %901 = vmatpush2.msra.mxu0 0.0
  %902 = vmatprep.subr.mxu0 0.0
  %903 = vmatpush2.msra.mxu0 0.0
  %904 = vmatprep.subr.mxu0 0.0
  %905 = vmatpush2.msra.mxu0 0.0
  %906 = vmatprep.subr.mxu0 0.0
  %907 = vmatpush2.msra.mxu0 0.0
  %908 = vmatprep.subr.mxu0 0.0
  %909 = vmatpush2.msra.mxu0 0.0
  %910 = vmatprep.mubr.f32.mxu0 0.0
  %911 = vmatmul.mubr.f32.gmra.mxu0 %v823
  %v912 = vpop.f32.mrf.mxu0
  %v913 = vadd.f32 0.0, %v912
  %v914 = vpop.f32.mrf.mxu0
  %915 = vmatprep.mubr.f32.mxu0 0.0
  %916 = vmatmul.mubr.f32.gmra.mxu0 %v826
  %v917 = vpop.f32.mrf.mxu0
  %v918 = vadd.f32 0.0, %v917
  %v919 = vpop.f32.mrf.mxu0
  %920 = vmatprep.mubr.f32.mxu0 0.0
  %921 = vmatmul.mubr.f32.gmra.mxu0 %v829
  %v922 = vpop.f32.mrf.mxu0
  %v923 = vadd.f32 0.0, %v922
  %v924 = vpop.f32.mrf.mxu0
  %925 = vmatprep.mubr.f32.mxu0 0.0
  %926 = vmatmul.mubr.f32.gmra.mxu0 %v832
  %v927 = vpop.f32.mrf.mxu0
  %v928 = vadd.f32 0.0, %v927
  %v929 = vpop.f32.mrf.mxu0
  %930 = vmatprep.mubr.f32.mxu0 0.0
  %931 = vmatmul.mubr.f32.gmra.mxu0 %v835
  %v932 = vpop.f32.mrf.mxu0
  %v933 = vadd.f32 0.0, %v932
  %v934 = vpop.f32.mrf.mxu0
  %935 = vmatprep.mubr.f32.mxu0 0.0
  %936 = vmatmul.mubr.f32.gmra.mxu0 %v838
  %v937 = vpop.f32.mrf.mxu0
  %v938 = vadd.f32 0.0, %v937
  %v939 = vpop.f32.mrf.mxu0
  %940 = vmatprep.mubr.f32.mxu0 0.0
  %941 = vmatmul.mubr.f32.gmra.mxu0 %v841
  %v942 = vpop.f32.mrf.mxu0
  %v943 = vadd.f32 0.0, %v942
  %v944 = vpop.f32.mrf.mxu0
  %945 = vmatprep.mubr.f32.mxu0 0.0
  %946 = vmatmul.mubr.f32.gmra.mxu0 %v844
  %v947 = vpop.f32.mrf.mxu0
  %v948 = vadd.f32 0.0, %v947
  %v949 = vpop.f32.mrf.mxu0
  %950 = vdwg.mxu0
  %v951 = vadd.f32 %v419, %v913
  %v952 = vadd.f32 %v424, %v918
  %v953 = vadd.f32 %v429, %v923
  %v954 = vadd.f32 %v434, %v928
  %v955 = vadd.f32 %v439, %v933
  %v956 = vadd.f32 %v444, %v938
  %v957 = vadd.f32 %v449, %v943
  %v958 = vadd.f32 %v454, %v948
  %v959 = vtanh.pop %v951
  %v960 = vtanh.pop %v952
  %v961 = vtanh.pop %v953
  %v962 = vtanh.pop %v954
  %v963 = vtanh.pop %v955
  %v964 = vtanh.pop %v956
  %v965 = vtanh.pop %v957
  %v966 = vtanh.pop %v958
  %v968 = vsel %vm697, %v959, 0
  %v971 = vsel %vm697, %v960, 0
  %v974 = vsel %vm697, %v961, 0
  %v977 = vsel %vm697, %v962, 0
  %v980 = vsel %vm697, %v963, 0
  %v983 = vsel %vm697, %v964, 0
  %v986 = vsel %vm697, %v965, 0
  %v989 = vsel %vm697, %v966, 0
  %991 = vmatprep.subr.mxu0 0.0
  %992 = vmatpush1.msra.mxu0 0.0
  %993 = vmatprep.subr.mxu0 0.0
  %994 = vmatpush1.msra.mxu0 0.0
  %995 = vmatprep.subr.mxu0 0.0
  %996 = vmatpush1.msra.mxu0 0.0
  %997 = vmatprep.subr.mxu0 0.0
  %998 = vmatpush1.msra.mxu0 0.0
  %999 = vmatprep.subr.mxu0 0.0
  %1000 = vmatpush1.msra.mxu0 0.0
  %1001 = vmatprep.subr.mxu0 0.0
  %1002 = vmatpush1.msra.mxu0 0.0
  %1003 = vmatprep.subr.mxu0 0.0
  %1004 = vmatpush1.msra.mxu0 0.0
  %1005 = vmatprep.subr.mxu0 0.0
  %1006 = vmatpush1.msra.mxu0 0.0
  %1007 = vmatprep.subr.mxu0 0.0
  %1008 = vmatpush1.msra.mxu0 %v32
  %1009 = vmatprep.subr.mxu0 0.0
  %1010 = vmatpush1.msra.mxu0 %v31
  %1011 = vmatprep.subr.mxu0 0.0
  %1012 = vmatpush1.msra.mxu0 %v30
  %1013 = vmatprep.subr.mxu0 0.0
  %1014 = vmatpush1.msra.mxu0 %v29
  %1015 = vmatprep.subr.mxu0 0.0
  %1016 = vmatpush1.msra.mxu0 %v28
  %1017 = vmatprep.subr.mxu0 0.0
  %1018 = vmatpush1.msra.mxu0 %v27
  %1019 = vmatprep.subr.mxu0 0.0
  %1020 = vmatpush1.msra.mxu0 %v26
  %1021 = vmatprep.subr.mxu0 0.0
  %1022 = vmatpush1.msra.mxu0 %v25
  %1023 = vmatprep.subr.mxu0 0.0
  %1024 = vmatpush2.msra.mxu0 0.0
  %1025 = vmatprep.subr.mxu0 0.0
  %1026 = vmatpush2.msra.mxu0 0.0
  %1027 = vmatprep.subr.mxu0 0.0
  %1028 = vmatpush2.msra.mxu0 0.0
  %1029 = vmatprep.subr.mxu0 0.0
  %1030 = vmatpush2.msra.mxu0 0.0
  %1031 = vmatprep.subr.mxu0 0.0
  %1032 = vmatpush2.msra.mxu0 0.0
  %1033 = vmatprep.subr.mxu0 0.0
  %1034 = vmatpush2.msra.mxu0 0.0
  %1035 = vmatprep.subr.mxu0 0.0
  %1036 = vmatpush2.msra.mxu0 0.0
  %1037 = vmatprep.subr.mxu0 0.0
  %1038 = vmatpush2.msra.mxu0 0.0
  %1039 = vmatprep.subr.mxu0 0.0
  %1040 = vmatpush2.msra.mxu0 0.0
  %1041 = vmatprep.subr.mxu0 0.0
  %1042 = vmatpush2.msra.mxu0 0.0
  %1043 = vmatprep.subr.mxu0 0.0
  %1044 = vmatpush2.msra.mxu0 0.0
  %1045 = vmatprep.subr.mxu0 0.0
  %1046 = vmatpush2.msra.mxu0 0.0
  %1047 = vmatprep.subr.mxu0 0.0
  %1048 = vmatpush2.msra.mxu0 0.0
  %1049 = vmatprep.subr.mxu0 0.0
  %1050 = vmatpush2.msra.mxu0 0.0
  %1051 = vmatprep.subr.mxu0 0.0
  %1052 = vmatpush2.msra.mxu0 0.0
  %1053 = vmatprep.subr.mxu0 0.0
  %1054 = vmatpush2.msra.mxu0 0.0
  %1055 = vmatprep.mubr.f32.mxu0 0.0
  %1056 = vmatmul.mubr.f32.gmra.mxu0 %v968
  %v1057 = vpop.f32.mrf.mxu0
  %v1058 = vadd.f32 0.0, %v1057
  %v1059 = vpop.f32.mrf.mxu0
  %1060 = vmatprep.mubr.f32.mxu0 0.0
  %1061 = vmatmul.mubr.f32.gmra.mxu0 %v971
  %v1062 = vpop.f32.mrf.mxu0
  %v1063 = vadd.f32 0.0, %v1062
  %v1064 = vpop.f32.mrf.mxu0
  %1065 = vmatprep.mubr.f32.mxu0 0.0
  %1066 = vmatmul.mubr.f32.gmra.mxu0 %v974
  %v1067 = vpop.f32.mrf.mxu0
  %v1068 = vadd.f32 0.0, %v1067
  %v1069 = vpop.f32.mrf.mxu0
  %1070 = vmatprep.mubr.f32.mxu0 0.0
  %1071 = vmatmul.mubr.f32.gmra.mxu0 %v977
  %v1072 = vpop.f32.mrf.mxu0
  %v1073 = vadd.f32 0.0, %v1072
  %v1074 = vpop.f32.mrf.mxu0
  %1075 = vmatprep.mubr.f32.mxu0 0.0
  %1076 = vmatmul.mubr.f32.gmra.mxu0 %v980
  %v1077 = vpop.f32.mrf.mxu0
  %v1078 = vadd.f32 0.0, %v1077
  %v1079 = vpop.f32.mrf.mxu0
  %1080 = vmatprep.mubr.f32.mxu0 0.0
  %1081 = vmatmul.mubr.f32.gmra.mxu0 %v983
  %v1082 = vpop.f32.mrf.mxu0
  %v1083 = vadd.f32 0.0, %v1082
  %v1084 = vpop.f32.mrf.mxu0
  %1085 = vmatprep.mubr.f32.mxu0 0.0
  %1086 = vmatmul.mubr.f32.gmra.mxu0 %v986
  %v1087 = vpop.f32.mrf.mxu0
  %v1088 = vadd.f32 0.0, %v1087
  %v1089 = vpop.f32.mrf.mxu0
  %1090 = vmatprep.mubr.f32.mxu0 0.0
  %1091 = vmatmul.mubr.f32.gmra.mxu0 %v989
  %v1092 = vpop.f32.mrf.mxu0
  %v1093 = vadd.f32 0.0, %v1092
  %v1094 = vpop.f32.mrf.mxu0
  %1095 = vdwg.mxu0
  %v1096 = vadd.f32 %v459, %v1058
  %v1097 = vadd.f32 %v464, %v1063
  %v1098 = vadd.f32 %v469, %v1068
  %v1099 = vadd.f32 %v474, %v1073
  %v1100 = vadd.f32 %v479, %v1078
  %v1101 = vadd.f32 %v484, %v1083
  %v1102 = vadd.f32 %v489, %v1088
  %v1103 = vadd.f32 %v494, %v1093
  %v1104 = vtanh.pop %v1096
  %v1105 = vtanh.pop %v1097
  %v1106 = vtanh.pop %v1098
  %v1107 = vtanh.pop %v1099
  %v1108 = vtanh.pop %v1100
  %v1109 = vtanh.pop %v1101
  %v1110 = vtanh.pop %v1102
  %v1111 = vtanh.pop %v1103
  %v1113 = vsel %vm697, %v1104, 0
  %v1116 = vsel %vm697, %v1105, 0
  %v1119 = vsel %vm697, %v1106, 0
  %v1122 = vsel %vm697, %v1107, 0
  %v1125 = vsel %vm697, %v1108, 0
  %v1128 = vsel %vm697, %v1109, 0
  %v1131 = vsel %vm697, %v1110, 0
  %v1134 = vsel %vm697, %v1111, 0
  %1136 = vmatprep.subr.mxu0 0.0
  %1137 = vmatpush1.msra.mxu0 0.0
  %1138 = vmatprep.subr.mxu0 0.0
  %1139 = vmatpush1.msra.mxu0 0.0
  %1140 = vmatprep.subr.mxu0 0.0
  %1141 = vmatpush1.msra.mxu0 0.0
  %1142 = vmatprep.subr.mxu0 0.0
  %1143 = vmatpush1.msra.mxu0 0.0
  %1144 = vmatprep.subr.mxu0 0.0
  %1145 = vmatpush1.msra.mxu0 0.0
  %1146 = vmatprep.subr.mxu0 0.0
  %1147 = vmatpush1.msra.mxu0 0.0
  %1148 = vmatprep.subr.mxu0 0.0
  %1149 = vmatpush1.msra.mxu0 0.0
  %1150 = vmatprep.subr.mxu0 0.0
  %1151 = vmatpush1.msra.mxu0 0.0
  %1152 = vmatprep.subr.mxu0 0.0
  %1153 = vmatpush1.msra.mxu0 %v32
  %1154 = vmatprep.subr.mxu0 0.0
  %1155 = vmatpush1.msra.mxu0 %v31
  %1156 = vmatprep.subr.mxu0 0.0
  %1157 = vmatpush1.msra.mxu0 %v30
  %1158 = vmatprep.subr.mxu0 0.0
  %1159 = vmatpush1.msra.mxu0 %v29
  %1160 = vmatprep.subr.mxu0 0.0
  %1161 = vmatpush1.msra.mxu0 %v28
  %1162 = vmatprep.subr.mxu0 0.0
  %1163 = vmatpush1.msra.mxu0 %v27
  %1164 = vmatprep.subr.mxu0 0.0
  %1165 = vmatpush1.msra.mxu0 %v26
  %1166 = vmatprep.subr.mxu0 0.0
  %1167 = vmatpush1.msra.mxu0 %v25
  %1168 = vmatprep.subr.mxu0 0.0
  %1169 = vmatpush2.msra.mxu0 0.0
  %1170 = vmatprep.subr.mxu0 0.0
  %1171 = vmatpush2.msra.mxu0 0.0
  %1172 = vmatprep.subr.mxu0 0.0
  %1173 = vmatpush2.msra.mxu0 0.0
  %1174 = vmatprep.subr.mxu0 0.0
  %1175 = vmatpush2.msra.mxu0 0.0
  %1176 = vmatprep.subr.mxu0 0.0
  %1177 = vmatpush2.msra.mxu0 0.0
  %1178 = vmatprep.subr.mxu0 0.0
  %1179 = vmatpush2.msra.mxu0 0.0
  %1180 = vmatprep.subr.mxu0 0.0
  %1181 = vmatpush2.msra.mxu0 0.0
  %1182 = vmatprep.subr.mxu0 0.0
  %1183 = vmatpush2.msra.mxu0 0.0
  %1184 = vmatprep.subr.mxu0 0.0
  %1185 = vmatpush2.msra.mxu0 0.0
  %1186 = vmatprep.subr.mxu0 0.0
  %1187 = vmatpush2.msra.mxu0 0.0
  %1188 = vmatprep.subr.mxu0 0.0
  %1189 = vmatpush2.msra.mxu0 0.0
  %1190 = vmatprep.subr.mxu0 0.0
  %1191 = vmatpush2.msra.mxu0 0.0
  %1192 = vmatprep.subr.mxu0 0.0
  %1193 = vmatpush2.msra.mxu0 0.0
  %1194 = vmatprep.subr.mxu0 0.0
  %1195 = vmatpush2.msra.mxu0 0.0
  %1196 = vmatprep.subr.mxu0 0.0
  %1197 = vmatpush2.msra.mxu0 0.0
  %1198 = vmatprep.subr.mxu0 0.0
  %1199 = vmatpush2.msra.mxu0 0.0
  %1200 = vmatprep.mubr.f32.mxu0 0.0
  %1201 = vmatmul.mubr.f32.gmra.mxu0 %v1113
  %v1202 = vpop.f32.mrf.mxu0
  %v1203 = vadd.f32 0.0, %v1202
  %v1204 = vpop.f32.mrf.mxu0
  %1205 = vmatprep.mubr.f32.mxu0 0.0
  %1206 = vmatmul.mubr.f32.gmra.mxu0 %v1116
  %v1207 = vpop.f32.mrf.mxu0
  %v1208 = vadd.f32 0.0, %v1207
  %v1209 = vpop.f32.mrf.mxu0
  %1210 = vmatprep.mubr.f32.mxu0 0.0
  %1211 = vmatmul.mubr.f32.gmra.mxu0 %v1119
  %v1212 = vpop.f32.mrf.mxu0
  %v1213 = vadd.f32 0.0, %v1212
  %v1214 = vpop.f32.mrf.mxu0
  %1215 = vmatprep.mubr.f32.mxu0 0.0
  %1216 = vmatmul.mubr.f32.gmra.mxu0 %v1122
  %v1217 = vpop.f32.mrf.mxu0
  %v1218 = vadd.f32 0.0, %v1217
  %v1219 = vpop.f32.mrf.mxu0
  %1220 = vmatprep.mubr.f32.mxu0 0.0
  %1221 = vmatmul.mubr.f32.gmra.mxu0 %v1125
  %v1222 = vpop.f32.mrf.mxu0
  %v1223 = vadd.f32 0.0, %v1222
  %v1224 = vpop.f32.mrf.mxu0
  %1225 = vmatprep.mubr.f32.mxu0 0.0
  %1226 = vmatmul.mubr.f32.gmra.mxu0 %v1128
  %v1227 = vpop.f32.mrf.mxu0
  %v1228 = vadd.f32 0.0, %v1227
  %v1229 = vpop.f32.mrf.mxu0
  %1230 = vmatprep.mubr.f32.mxu0 0.0
  %1231 = vmatmul.mubr.f32.gmra.mxu0 %v1131
  %v1232 = vpop.f32.mrf.mxu0
  %v1233 = vadd.f32 0.0, %v1232
  %v1234 = vpop.f32.mrf.mxu0
  %1235 = vmatprep.mubr.f32.mxu0 0.0
  %1236 = vmatmul.mubr.f32.gmra.mxu0 %v1134
  %v1237 = vpop.f32.mrf.mxu0
  %v1238 = vadd.f32 0.0, %v1237
  %v1239 = vpop.f32.mrf.mxu0
  %1240 = vdwg.mxu0
  %v1241 = vadd.f32 %v499, %v1203
  %v1242 = vadd.f32 %v504, %v1208
  %v1243 = vadd.f32 %v509, %v1213
  %v1244 = vadd.f32 %v514, %v1218
  %v1245 = vadd.f32 %v519, %v1223
  %v1246 = vadd.f32 %v524, %v1228
  %v1247 = vadd.f32 %v529, %v1233
  %v1248 = vadd.f32 %v534, %v1238
  %v1249 = vtanh.pop %v1241
  %v1250 = vtanh.pop %v1242
  %v1251 = vtanh.pop %v1243
  %v1252 = vtanh.pop %v1244
  %v1253 = vtanh.pop %v1245
  %v1254 = vtanh.pop %v1246
  %v1255 = vtanh.pop %v1247
  %v1256 = vtanh.pop %v1248
  %v1258 = vsel %vm697, %v1249, 0
  %v1261 = vsel %vm697, %v1250, 0
  %v1264 = vsel %vm697, %v1251, 0
  %v1267 = vsel %vm697, %v1252, 0
  %v1270 = vsel %vm697, %v1253, 0
  %v1273 = vsel %vm697, %v1254, 0
  %v1276 = vsel %vm697, %v1255, 0
  %v1279 = vsel %vm697, %v1256, 0
  %1281 = vmatprep.subr.mxu0 0.0
  %1282 = vmatpush1.msra.mxu0 0.0
  %1283 = vmatprep.subr.mxu0 0.0
  %1284 = vmatpush1.msra.mxu0 0.0
  %1285 = vmatprep.subr.mxu0 0.0
  %1286 = vmatpush1.msra.mxu0 0.0
  %1287 = vmatprep.subr.mxu0 0.0
  %1288 = vmatpush1.msra.mxu0 0.0
  %1289 = vmatprep.subr.mxu0 0.0
  %1290 = vmatpush1.msra.mxu0 0.0
  %1291 = vmatprep.subr.mxu0 0.0
  %1292 = vmatpush1.msra.mxu0 0.0
  %1293 = vmatprep.subr.mxu0 0.0
  %1294 = vmatpush1.msra.mxu0 0.0
  %1295 = vmatprep.subr.mxu0 0.0
  %1296 = vmatpush1.msra.mxu0 0.0
  %1297 = vmatprep.subr.mxu0 0.0
  %1298 = vmatpush1.msra.mxu0 %v32
  %1299 = vmatprep.subr.mxu0 0.0
  %1300 = vmatpush1.msra.mxu0 %v31
  %1301 = vmatprep.subr.mxu0 0.0
  %1302 = vmatpush1.msra.mxu0 %v30
  %1303 = vmatprep.subr.mxu0 0.0
  %1304 = vmatpush1.msra.mxu0 %v29
  %1305 = vmatprep.subr.mxu0 0.0
  %1306 = vmatpush1.msra.mxu0 %v28
  %1307 = vmatprep.subr.mxu0 0.0
  %1308 = vmatpush1.msra.mxu0 %v27
  %1309 = vmatprep.subr.mxu0 0.0
  %1310 = vmatpush1.msra.mxu0 %v26
  %1311 = vmatprep.subr.mxu0 0.0
  %1312 = vmatpush1.msra.mxu0 %v25
  %1313 = vmatprep.subr.mxu0 0.0
  %1314 = vmatpush2.msra.mxu0 0.0
  %1315 = vmatprep.subr.mxu0 0.0
  %1316 = vmatpush2.msra.mxu0 0.0
  %1317 = vmatprep.subr.mxu0 0.0
  %1318 = vmatpush2.msra.mxu0 0.0
  %1319 = vmatprep.subr.mxu0 0.0
  %1320 = vmatpush2.msra.mxu0 0.0
  %1321 = vmatprep.subr.mxu0 0.0
  %1322 = vmatpush2.msra.mxu0 0.0
  %1323 = vmatprep.subr.mxu0 0.0
  %1324 = vmatpush2.msra.mxu0 0.0
  %1325 = vmatprep.subr.mxu0 0.0
  %1326 = vmatpush2.msra.mxu0 0.0
  %1327 = vmatprep.subr.mxu0 0.0
  %1328 = vmatpush2.msra.mxu0 0.0
  %1329 = vmatprep.subr.mxu0 0.0
  %1330 = vmatpush2.msra.mxu0 0.0
  %1331 = vmatprep.subr.mxu0 0.0
  %1332 = vmatpush2.msra.mxu0 0.0
  %1333 = vmatprep.subr.mxu0 0.0
  %1334 = vmatpush2.msra.mxu0 0.0
  %1335 = vmatprep.subr.mxu0 0.0
  %1336 = vmatpush2.msra.mxu0 0.0
  %1337 = vmatprep.subr.mxu0 0.0
  %1338 = vmatpush2.msra.mxu0 0.0
  %1339 = vmatprep.subr.mxu0 0.0
  %1340 = vmatpush2.msra.mxu0 0.0
  %1341 = vmatprep.subr.mxu0 0.0
  %1342 = vmatpush2.msra.mxu0 0.0
  %1343 = vmatprep.subr.mxu0 0.0
  %1344 = vmatpush2.msra.mxu0 0.0
  %1345 = vmatprep.mubr.f32.mxu0 0.0
  %1346 = vmatmul.mubr.f32.gmra.mxu0 %v1258
  %v1347 = vpop.f32.mrf.mxu0
  %v1348 = vadd.f32 0.0, %v1347
  %v1349 = vpop.f32.mrf.mxu0
  %1350 = vmatprep.mubr.f32.mxu0 0.0
  %1351 = vmatmul.mubr.f32.gmra.mxu0 %v1261
  %v1352 = vpop.f32.mrf.mxu0
  %v1353 = vadd.f32 0.0, %v1352
  %v1354 = vpop.f32.mrf.mxu0
  %1355 = vmatprep.mubr.f32.mxu0 0.0
  %1356 = vmatmul.mubr.f32.gmra.mxu0 %v1264
  %v1357 = vpop.f32.mrf.mxu0
  %v1358 = vadd.f32 0.0, %v1357
  %v1359 = vpop.f32.mrf.mxu0
  %1360 = vmatprep.mubr.f32.mxu0 0.0
  %1361 = vmatmul.mubr.f32.gmra.mxu0 %v1267
  %v1362 = vpop.f32.mrf.mxu0
  %v1363 = vadd.f32 0.0, %v1362
  %v1364 = vpop.f32.mrf.mxu0
  %1365 = vmatprep.mubr.f32.mxu0 0.0
  %1366 = vmatmul.mubr.f32.gmra.mxu0 %v1270
  %v1367 = vpop.f32.mrf.mxu0
  %v1368 = vadd.f32 0.0, %v1367
  %v1369 = vpop.f32.mrf.mxu0
  %1370 = vmatprep.mubr.f32.mxu0 0.0
  %1371 = vmatmul.mubr.f32.gmra.mxu0 %v1273
  %v1372 = vpop.f32.mrf.mxu0
  %v1373 = vadd.f32 0.0, %v1372
  %v1374 = vpop.f32.mrf.mxu0
  %1375 = vmatprep.mubr.f32.mxu0 0.0
  %1376 = vmatmul.mubr.f32.gmra.mxu0 %v1276
  %v1377 = vpop.f32.mrf.mxu0
  %v1378 = vadd.f32 0.0, %v1377
  %v1379 = vpop.f32.mrf.mxu0
  %1380 = vmatprep.mubr.f32.mxu0 0.0
  %1381 = vmatmul.mubr.f32.gmra.mxu0 %v1279
  %v1382 = vpop.f32.mrf.mxu0
  %v1383 = vadd.f32 0.0, %v1382
  %v1384 = vpop.f32.mrf.mxu0
  %1385 = vdwg.mxu0
  %v1386 = vadd.f32 %v539, %v1348
  %v1387 = vadd.f32 %v544, %v1353
  %v1388 = vadd.f32 %v549, %v1358
  %v1389 = vadd.f32 %v554, %v1363
  %v1390 = vadd.f32 %v559, %v1368
  %v1391 = vadd.f32 %v564, %v1373
  %v1392 = vadd.f32 %v569, %v1378
  %v1393 = vadd.f32 %v574, %v1383
  %v1394 = vtanh.pop %v1386
  %v1395 = vtanh.pop %v1387
  %v1396 = vtanh.pop %v1388
  %v1397 = vtanh.pop %v1389
  %v1398 = vtanh.pop %v1390
  %v1399 = vtanh.pop %v1391
  %v1400 = vtanh.pop %v1392
  %v1401 = vtanh.pop %v1393
  %v1403 = vsel %vm697, %v1394, 0
  %v1406 = vsel %vm697, %v1395, 0
  %v1409 = vsel %vm697, %v1396, 0
  %v1412 = vsel %vm697, %v1397, 0
  %v1415 = vsel %vm697, %v1398, 0
  %v1418 = vsel %vm697, %v1399, 0
  %v1421 = vsel %vm697, %v1400, 0
  %v1424 = vsel %vm697, %v1401, 0
  %1426 = vmatprep.subr.mxu0 0.0
  %1427 = vmatpush1.msra.mxu0 0.0
  %1428 = vmatprep.subr.mxu0 0.0
  %1429 = vmatpush1.msra.mxu0 0.0
  %1430 = vmatprep.subr.mxu0 0.0
  %1431 = vmatpush1.msra.mxu0 0.0
  %1432 = vmatprep.subr.mxu0 0.0
  %1433 = vmatpush1.msra.mxu0 0.0
  %1434 = vmatprep.subr.mxu0 0.0
  %1435 = vmatpush1.msra.mxu0 0.0
  %1436 = vmatprep.subr.mxu0 0.0
  %1437 = vmatpush1.msra.mxu0 0.0
  %1438 = vmatprep.subr.mxu0 0.0
  %1439 = vmatpush1.msra.mxu0 0.0
  %1440 = vmatprep.subr.mxu0 0.0
  %1441 = vmatpush1.msra.mxu0 0.0
  %1442 = vmatprep.subr.mxu0 0.0
  %1443 = vmatpush1.msra.mxu0 %v32
  %1444 = vmatprep.subr.mxu0 0.0
  %1445 = vmatpush1.msra.mxu0 %v31
  %1446 = vmatprep.subr.mxu0 0.0
  %1447 = vmatpush1.msra.mxu0 %v30
  %1448 = vmatprep.subr.mxu0 0.0
  %1449 = vmatpush1.msra.mxu0 %v29
  %1450 = vmatprep.subr.mxu0 0.0
  %1451 = vmatpush1.msra.mxu0 %v28
  %1452 = vmatprep.subr.mxu0 0.0
  %1453 = vmatpush1.msra.mxu0 %v27
  %1454 = vmatprep.subr.mxu0 0.0
  %1455 = vmatpush1.msra.mxu0 %v26
  %1456 = vmatprep.subr.mxu0 0.0
  %1457 = vmatpush1.msra.mxu0 %v25
  %1458 = vmatprep.subr.mxu0 0.0
  %1459 = vmatpush2.msra.mxu0 0.0
  %1460 = vmatprep.subr.mxu0 0.0
  %1461 = vmatpush2.msra.mxu0 0.0
  %1462 = vmatprep.subr.mxu0 0.0
  %1463 = vmatpush2.msra.mxu0 0.0
  %1464 = vmatprep.subr.mxu0 0.0
  %1465 = vmatpush2.msra.mxu0 0.0
  %1466 = vmatprep.subr.mxu0 0.0
  %1467 = vmatpush2.msra.mxu0 0.0
  %1468 = vmatprep.subr.mxu0 0.0
  %1469 = vmatpush2.msra.mxu0 0.0
  %1470 = vmatprep.subr.mxu0 0.0
  %1471 = vmatpush2.msra.mxu0 0.0
  %1472 = vmatprep.subr.mxu0 0.0
  %1473 = vmatpush2.msra.mxu0 0.0
  %1474 = vmatprep.subr.mxu0 0.0
  %1475 = vmatpush2.msra.mxu0 0.0
  %1476 = vmatprep.subr.mxu0 0.0
  %1477 = vmatpush2.msra.mxu0 0.0
  %1478 = vmatprep.subr.mxu0 0.0
  %1479 = vmatpush2.msra.mxu0 0.0
  %1480 = vmatprep.subr.mxu0 0.0
  %1481 = vmatpush2.msra.mxu0 0.0
  %1482 = vmatprep.subr.mxu0 0.0
  %1483 = vmatpush2.msra.mxu0 0.0
  %1484 = vmatprep.subr.mxu0 0.0
  %1485 = vmatpush2.msra.mxu0 0.0
  %1486 = vmatprep.subr.mxu0 0.0
  %1487 = vmatpush2.msra.mxu0 0.0
  %1488 = vmatprep.subr.mxu0 0.0
  %1489 = vmatpush2.msra.mxu0 0.0
  %1490 = vmatprep.mubr.f32.mxu0 0.0
  %1491 = vmatmul.mubr.f32.gmra.mxu0 %v1403
  %v1492 = vpop.f32.mrf.mxu0
  %v1493 = vadd.f32 0.0, %v1492
  %v1494 = vpop.f32.mrf.mxu0
  %1495 = vmatprep.mubr.f32.mxu0 0.0
  %1496 = vmatmul.mubr.f32.gmra.mxu0 %v1406
  %v1497 = vpop.f32.mrf.mxu0
  %v1498 = vadd.f32 0.0, %v1497
  %v1499 = vpop.f32.mrf.mxu0
  %1500 = vmatprep.mubr.f32.mxu0 0.0
  %1501 = vmatmul.mubr.f32.gmra.mxu0 %v1409
  %v1502 = vpop.f32.mrf.mxu0
  %v1503 = vadd.f32 0.0, %v1502
  %v1504 = vpop.f32.mrf.mxu0
  %1505 = vmatprep.mubr.f32.mxu0 0.0
  %1506 = vmatmul.mubr.f32.gmra.mxu0 %v1412
  %v1507 = vpop.f32.mrf.mxu0
  %v1508 = vadd.f32 0.0, %v1507
  %v1509 = vpop.f32.mrf.mxu0
  %1510 = vmatprep.mubr.f32.mxu0 0.0
  %1511 = vmatmul.mubr.f32.gmra.mxu0 %v1415
  %v1512 = vpop.f32.mrf.mxu0
  %v1513 = vadd.f32 0.0, %v1512
  %v1514 = vpop.f32.mrf.mxu0
  %1515 = vmatprep.mubr.f32.mxu0 0.0
  %1516 = vmatmul.mubr.f32.gmra.mxu0 %v1418
  %v1517 = vpop.f32.mrf.mxu0
  %v1518 = vadd.f32 0.0, %v1517
  %v1519 = vpop.f32.mrf.mxu0
  %1520 = vmatprep.mubr.f32.mxu0 0.0
  %1521 = vmatmul.mubr.f32.gmra.mxu0 %v1421
  %v1522 = vpop.f32.mrf.mxu0
  %v1523 = vadd.f32 0.0, %v1522
  %v1524 = vpop.f32.mrf.mxu0
  %1525 = vmatprep.mubr.f32.mxu0 0.0
  %1526 = vmatmul.mubr.f32.gmra.mxu0 %v1424
  %v1527 = vpop.f32.mrf.mxu0
  %v1528 = vadd.f32 0.0, %v1527
  %v1529 = vpop.f32.mrf.mxu0
  %1530 = vdwg.mxu0
  %v1531 = vadd.f32 %v579, %v1493
  %v1532 = vadd.f32 %v584, %v1498
  %v1533 = vadd.f32 %v589, %v1503
  %v1534 = vadd.f32 %v594, %v1508
  %v1535 = vadd.f32 %v599, %v1513
  %v1536 = vadd.f32 %v604, %v1518
  %v1537 = vadd.f32 %v609, %v1523
  %v1538 = vadd.f32 %v614, %v1528
  %v1539 = vtanh.pop %v1531
  %v1540 = vtanh.pop %v1532
  %v1541 = vtanh.pop %v1533
  %v1542 = vtanh.pop %v1534
  %v1543 = vtanh.pop %v1535
  %v1544 = vtanh.pop %v1536
  %v1545 = vtanh.pop %v1537
  %v1546 = vtanh.pop %v1538
  %v1548 = vsel %vm697, %v1539, 0
  %v1551 = vsel %vm697, %v1540, 0
  %v1554 = vsel %vm697, %v1541, 0
  %v1557 = vsel %vm697, %v1542, 0
  %v1560 = vsel %vm697, %v1543, 0
  %v1563 = vsel %vm697, %v1544, 0
  %v1566 = vsel %vm697, %v1545, 0
  %v1569 = vsel %vm697, %v1546, 0
  %1571 = vmatprep.subr.mxu0 0.0
  %1572 = vmatpush1.msra.mxu0 0.0
  %1573 = vmatprep.subr.mxu0 0.0
  %1574 = vmatpush1.msra.mxu0 0.0
  %1575 = vmatprep.subr.mxu0 0.0
  %1576 = vmatpush1.msra.mxu0 0.0
  %1577 = vmatprep.subr.mxu0 0.0
  %1578 = vmatpush1.msra.mxu0 0.0
  %1579 = vmatprep.subr.mxu0 0.0
  %1580 = vmatpush1.msra.mxu0 0.0
  %1581 = vmatprep.subr.mxu0 0.0
  %1582 = vmatpush1.msra.mxu0 0.0
  %1583 = vmatprep.subr.mxu0 0.0
  %1584 = vmatpush1.msra.mxu0 0.0
  %1585 = vmatprep.subr.mxu0 0.0
  %1586 = vmatpush1.msra.mxu0 0.0
  %1587 = vmatprep.subr.mxu0 0.0
  %1588 = vmatpush1.msra.mxu0 %v32
  %1589 = vmatprep.subr.mxu0 0.0
  %1590 = vmatpush1.msra.mxu0 %v31
  %1591 = vmatprep.subr.mxu0 0.0
  %1592 = vmatpush1.msra.mxu0 %v30
  %1593 = vmatprep.subr.mxu0 0.0
  %1594 = vmatpush1.msra.mxu0 %v29
  %1595 = vmatprep.subr.mxu0 0.0
  %1596 = vmatpush1.msra.mxu0 %v28
  %1597 = vmatprep.subr.mxu0 0.0
  %1598 = vmatpush1.msra.mxu0 %v27
  %1599 = vmatprep.subr.mxu0 0.0
  %1600 = vmatpush1.msra.mxu0 %v26
  %1601 = vmatprep.subr.mxu0 0.0
  %1602 = vmatpush1.msra.mxu0 %v25
  %1603 = vmatprep.subr.mxu0 0.0
  %1604 = vmatpush2.msra.mxu0 0.0
  %1605 = vmatprep.subr.mxu0 0.0
  %1606 = vmatpush2.msra.mxu0 0.0
  %1607 = vmatprep.subr.mxu0 0.0
  %1608 = vmatpush2.msra.mxu0 0.0
  %1609 = vmatprep.subr.mxu0 0.0
  %1610 = vmatpush2.msra.mxu0 0.0
  %1611 = vmatprep.subr.mxu0 0.0
  %1612 = vmatpush2.msra.mxu0 0.0
  %1613 = vmatprep.subr.mxu0 0.0
  %1614 = vmatpush2.msra.mxu0 0.0
  %1615 = vmatprep.subr.mxu0 0.0
  %1616 = vmatpush2.msra.mxu0 0.0
  %1617 = vmatprep.subr.mxu0 0.0
  %1618 = vmatpush2.msra.mxu0 0.0
  %1619 = vmatprep.subr.mxu0 0.0
  %1620 = vmatpush2.msra.mxu0 0.0
  %1621 = vmatprep.subr.mxu0 0.0
  %1622 = vmatpush2.msra.mxu0 0.0
  %1623 = vmatprep.subr.mxu0 0.0
  %1624 = vmatpush2.msra.mxu0 0.0
  %1625 = vmatprep.subr.mxu0 0.0
  %1626 = vmatpush2.msra.mxu0 0.0
  %1627 = vmatprep.subr.mxu0 0.0
  %1628 = vmatpush2.msra.mxu0 0.0
  %1629 = vmatprep.subr.mxu0 0.0
  %1630 = vmatpush2.msra.mxu0 0.0
  %1631 = vmatprep.subr.mxu0 0.0
  %1632 = vmatpush2.msra.mxu0 0.0
  %1633 = vmatprep.subr.mxu0 0.0
  %1634 = vmatpush2.msra.mxu0 0.0
  %1635 = vmatprep.mubr.f32.mxu0 0.0
  %1636 = vmatmul.mubr.f32.gmra.mxu0 %v1548
  %v1637 = vpop.f32.mrf.mxu0
  %v1638 = vadd.f32 0.0, %v1637
  %v1639 = vpop.f32.mrf.mxu0
  %1640 = vmatprep.mubr.f32.mxu0 0.0
  %1641 = vmatmul.mubr.f32.gmra.mxu0 %v1551
  %v1642 = vpop.f32.mrf.mxu0
  %v1643 = vadd.f32 0.0, %v1642
  %v1644 = vpop.f32.mrf.mxu0
  %1645 = vmatprep.mubr.f32.mxu0 0.0
  %1646 = vmatmul.mubr.f32.gmra.mxu0 %v1554
  %v1647 = vpop.f32.mrf.mxu0
  %v1648 = vadd.f32 0.0, %v1647
  %v1649 = vpop.f32.mrf.mxu0
  %1650 = vmatprep.mubr.f32.mxu0 0.0
  %1651 = vmatmul.mubr.f32.gmra.mxu0 %v1557
  %v1652 = vpop.f32.mrf.mxu0
  %v1653 = vadd.f32 0.0, %v1652
  %v1654 = vpop.f32.mrf.mxu0
  %1655 = vmatprep.mubr.f32.mxu0 0.0
  %1656 = vmatmul.mubr.f32.gmra.mxu0 %v1560
  %v1657 = vpop.f32.mrf.mxu0
  %v1658 = vadd.f32 0.0, %v1657
  %v1659 = vpop.f32.mrf.mxu0
  %1660 = vmatprep.mubr.f32.mxu0 0.0
  %1661 = vmatmul.mubr.f32.gmra.mxu0 %v1563
  %v1662 = vpop.f32.mrf.mxu0
  %v1663 = vadd.f32 0.0, %v1662
  %v1664 = vpop.f32.mrf.mxu0
  %1665 = vmatprep.mubr.f32.mxu0 0.0
  %1666 = vmatmul.mubr.f32.gmra.mxu0 %v1566
  %v1667 = vpop.f32.mrf.mxu0
  %v1668 = vadd.f32 0.0, %v1667
  %v1669 = vpop.f32.mrf.mxu0
  %1670 = vmatprep.mubr.f32.mxu0 0.0
  %1671 = vmatmul.mubr.f32.gmra.mxu0 %v1569
  %v1672 = vpop.f32.mrf.mxu0
  %v1673 = vadd.f32 0.0, %v1672
  %v1674 = vpop.f32.mrf.mxu0
  %1675 = vdwg.mxu0
  %v1676 = vadd.f32 %v619, %v1638
  %v1677 = vadd.f32 %v624, %v1643
  %v1678 = vadd.f32 %v629, %v1648
  %v1679 = vadd.f32 %v634, %v1653
  %v1680 = vadd.f32 %v639, %v1658
  %v1681 = vadd.f32 %v644, %v1663
  %v1682 = vadd.f32 %v649, %v1668
  %v1683 = vadd.f32 %v654, %v1673
  %v1684 = vtanh.pop %v1676
  %v1685 = vtanh.pop %v1677
  %v1686 = vtanh.pop %v1678
  %v1687 = vtanh.pop %v1679
  %v1688 = vtanh.pop %v1680
  %v1689 = vtanh.pop %v1681
  %v1690 = vtanh.pop %v1682
  %v1691 = vtanh.pop %v1683
  %v1693 = vsel %vm697, %v1684, 0
  %v1696 = vsel %vm697, %v1685, 0
  %v1699 = vsel %vm697, %v1686, 0
  %v1702 = vsel %vm697, %v1687, 0
  %v1705 = vsel %vm697, %v1688, 0
  %v1708 = vsel %vm697, %v1689, 0
  %v1711 = vsel %vm697, %v1690, 0
  %v1714 = vsel %vm697, %v1691, 0
  %1716 = vmatprep.subr.mxu0 0.0
  %1717 = vmatpush1.msra.mxu0 0.0
  %1718 = vmatprep.subr.mxu0 0.0
  %1719 = vmatpush1.msra.mxu0 0.0
  %1720 = vmatprep.subr.mxu0 0.0
  %1721 = vmatpush1.msra.mxu0 0.0
  %1722 = vmatprep.subr.mxu0 0.0
  %1723 = vmatpush1.msra.mxu0 0.0
  %1724 = vmatprep.subr.mxu0 0.0
  %1725 = vmatpush1.msra.mxu0 0.0
  %1726 = vmatprep.subr.mxu0 0.0
  %1727 = vmatpush1.msra.mxu0 0.0
  %1728 = vmatprep.subr.mxu0 0.0
  %1729 = vmatpush1.msra.mxu0 0.0
  %1730 = vmatprep.subr.mxu0 0.0
  %1731 = vmatpush1.msra.mxu0 0.0
  %1732 = vmatprep.subr.mxu0 0.0
  %1733 = vmatpush1.msra.mxu0 %v32
  %1734 = vmatprep.subr.mxu0 0.0
  %1735 = vmatpush1.msra.mxu0 %v31
  %1736 = vmatprep.subr.mxu0 0.0
  %1737 = vmatpush1.msra.mxu0 %v30
  %1738 = vmatprep.subr.mxu0 0.0
  %1739 = vmatpush1.msra.mxu0 %v29
  %1740 = vmatprep.subr.mxu0 0.0
  %1741 = vmatpush1.msra.mxu0 %v28
  %1742 = vmatprep.subr.mxu0 0.0
  %1743 = vmatpush1.msra.mxu0 %v27
  %1744 = vmatprep.subr.mxu0 0.0
  %1745 = vmatpush1.msra.mxu0 %v26
  %1746 = vmatprep.subr.mxu0 0.0
  %1747 = vmatpush1.msra.mxu0 %v25
  %1748 = vmatprep.subr.mxu0 0.0
  %1749 = vmatpush2.msra.mxu0 0.0
  %1750 = vmatprep.subr.mxu0 0.0
  %1751 = vmatpush2.msra.mxu0 0.0
  %1752 = vmatprep.subr.mxu0 0.0
  %1753 = vmatpush2.msra.mxu0 0.0
  %1754 = vmatprep.subr.mxu0 0.0
  %1755 = vmatpush2.msra.mxu0 0.0
  %1756 = vmatprep.subr.mxu0 0.0
  %1757 = vmatpush2.msra.mxu0 0.0
  %1758 = vmatprep.subr.mxu0 0.0
  %1759 = vmatpush2.msra.mxu0 0.0
  %1760 = vmatprep.subr.mxu0 0.0
  %1761 = vmatpush2.msra.mxu0 0.0
  %1762 = vmatprep.subr.mxu0 0.0
  %1763 = vmatpush2.msra.mxu0 0.0
  %1764 = vmatprep.subr.mxu0 0.0
  %1765 = vmatpush2.msra.mxu0 0.0
  %1766 = vmatprep.subr.mxu0 0.0
  %1767 = vmatpush2.msra.mxu0 0.0
  %1768 = vmatprep.subr.mxu0 0.0
  %1769 = vmatpush2.msra.mxu0 0.0
  %1770 = vmatprep.subr.mxu0 0.0
  %1771 = vmatpush2.msra.mxu0 0.0
  %1772 = vmatprep.subr.mxu0 0.0
  %1773 = vmatpush2.msra.mxu0 0.0
  %1774 = vmatprep.subr.mxu0 0.0
  %1775 = vmatpush2.msra.mxu0 0.0
  %1776 = vmatprep.subr.mxu0 0.0
  %1777 = vmatpush2.msra.mxu0 0.0
  %1778 = vmatprep.subr.mxu0 0.0
  %1779 = vmatpush2.msra.mxu0 0.0
  %1780 = vmatprep.mubr.f32.mxu0 0.0
  %1781 = vmatmul.mubr.f32.gmra.mxu0 %v1693
  %v1782 = vpop.f32.mrf.mxu0
  %v1783 = vadd.f32 0.0, %v1782
  %v1784 = vpop.f32.mrf.mxu0
  %1785 = vmatprep.mubr.f32.mxu0 0.0
  %1786 = vmatmul.mubr.f32.gmra.mxu0 %v1696
  %v1787 = vpop.f32.mrf.mxu0
  %v1788 = vadd.f32 0.0, %v1787
  %v1789 = vpop.f32.mrf.mxu0
  %1790 = vmatprep.mubr.f32.mxu0 0.0
  %1791 = vmatmul.mubr.f32.gmra.mxu0 %v1699
  %v1792 = vpop.f32.mrf.mxu0
  %v1793 = vadd.f32 0.0, %v1792
  %v1794 = vpop.f32.mrf.mxu0
  %1795 = vmatprep.mubr.f32.mxu0 0.0
  %1796 = vmatmul.mubr.f32.gmra.mxu0 %v1702
  %v1797 = vpop.f32.mrf.mxu0
  %v1798 = vadd.f32 0.0, %v1797
  %v1799 = vpop.f32.mrf.mxu0
  %1800 = vmatprep.mubr.f32.mxu0 0.0
  %1801 = vmatmul.mubr.f32.gmra.mxu0 %v1705
  %v1802 = vpop.f32.mrf.mxu0
  %v1803 = vadd.f32 0.0, %v1802
  %v1804 = vpop.f32.mrf.mxu0
  %1805 = vmatprep.mubr.f32.mxu0 0.0
  %1806 = vmatmul.mubr.f32.gmra.mxu0 %v1708
  %v1807 = vpop.f32.mrf.mxu0
  %v1808 = vadd.f32 0.0, %v1807
  %v1809 = vpop.f32.mrf.mxu0
  %1810 = vmatprep.mubr.f32.mxu0 0.0
  %1811 = vmatmul.mubr.f32.gmra.mxu0 %v1711
  %v1812 = vpop.f32.mrf.mxu0
  %v1813 = vadd.f32 0.0, %v1812
  %v1814 = vpop.f32.mrf.mxu0
  %1815 = vmatprep.mubr.f32.mxu0 0.0
  %1816 = vmatmul.mubr.f32.gmra.mxu0 %v1714
  %v1817 = vpop.f32.mrf.mxu0
  %v1818 = vadd.f32 0.0, %v1817
  %v1819 = vpop.f32.mrf.mxu0
  %1820 = vdwg.mxu0
  %v1821 = vadd.f32 %v659, %v1783
  %v1822 = vadd.f32 %v664, %v1788
  %v1823 = vadd.f32 %v669, %v1793
  %v1824 = vadd.f32 %v674, %v1798
  %v1825 = vadd.f32 %v679, %v1803
  %v1826 = vadd.f32 %v684, %v1808
  %v1827 = vadd.f32 %v689, %v1813
  %v1828 = vadd.f32 %v694, %v1818
  %v1829 = vtanh.pop %v1821
  %v1830 = vtanh.pop %v1822
  %v1831 = vtanh.pop %v1823
  %v1832 = vtanh.pop %v1824
  %v1833 = vtanh.pop %v1825
  %v1834 = vtanh.pop %v1826
  %v1835 = vtanh.pop %v1827
  %v1836 = vtanh.pop %v1828
  %v1838 = vsel %vm697, %v1829, 0
  %v1841 = vsel %vm697, %v1830, 0
  %v1844 = vsel %vm697, %v1831, 0
  %v1847 = vsel %vm697, %v1832, 0
  %v1850 = vsel %vm697, %v1833, 0
  %v1853 = vsel %vm697, %v1834, 0
  %v1856 = vsel %vm697, %v1835, 0
  %v1859 = vsel %vm697, %v1836, 0
  %1861 = vmatprep.subr.mxu0 0.0
  %1862 = vmatpush1.msra.mxu0 0.0
  %1863 = vmatprep.subr.mxu0 0.0
  %1864 = vmatpush1.msra.mxu0 0.0
  %1865 = vmatprep.subr.mxu0 0.0
  %1866 = vmatpush1.msra.mxu0 0.0
  %1867 = vmatprep.subr.mxu0 0.0
  %1868 = vmatpush1.msra.mxu0 0.0
  %1869 = vmatprep.subr.mxu0 0.0
  %1870 = vmatpush1.msra.mxu0 0.0
  %1871 = vmatprep.subr.mxu0 0.0
  %1872 = vmatpush1.msra.mxu0 0.0
  %1873 = vmatprep.subr.mxu0 0.0
  %1874 = vmatpush1.msra.mxu0 0.0
  %1875 = vmatprep.subr.mxu0 0.0
  %1876 = vmatpush1.msra.mxu0 0.0
  %1877 = vmatprep.subr.mxu0 0.0
  %1878 = vmatpush1.msra.mxu0 %v40
  %1879 = vmatprep.subr.mxu0 0.0
  %1880 = vmatpush1.msra.mxu0 %v39
  %1881 = vmatprep.subr.mxu0 0.0
  %1882 = vmatpush1.msra.mxu0 %v38
  %1883 = vmatprep.subr.mxu0 0.0
  %1884 = vmatpush1.msra.mxu0 %v37
  %1885 = vmatprep.subr.mxu0 0.0
  %1886 = vmatpush1.msra.mxu0 %v36
  %1887 = vmatprep.subr.mxu0 0.0
  %1888 = vmatpush1.msra.mxu0 %v35
  %1889 = vmatprep.subr.mxu0 0.0
  %1890 = vmatpush1.msra.mxu0 %v34
  %1891 = vmatprep.subr.mxu0 0.0
  %1892 = vmatpush1.msra.mxu0 %v33
  %1893 = vmatprep.subr.mxu0 0.0
  %1894 = vmatpush2.msra.mxu0 0.0
  %1895 = vmatprep.subr.mxu0 0.0
  %1896 = vmatpush2.msra.mxu0 0.0
  %1897 = vmatprep.subr.mxu0 0.0
  %1898 = vmatpush2.msra.mxu0 0.0
  %1899 = vmatprep.subr.mxu0 0.0
  %1900 = vmatpush2.msra.mxu0 0.0
  %1901 = vmatprep.subr.mxu0 0.0
  %1902 = vmatpush2.msra.mxu0 0.0
  %1903 = vmatprep.subr.mxu0 0.0
  %1904 = vmatpush2.msra.mxu0 0.0
  %1905 = vmatprep.subr.mxu0 0.0
  %1906 = vmatpush2.msra.mxu0 0.0
  %1907 = vmatprep.subr.mxu0 0.0
  %1908 = vmatpush2.msra.mxu0 0.0
  %1909 = vmatprep.subr.mxu0 0.0
  %1910 = vmatpush2.msra.mxu0 0.0
  %1911 = vmatprep.subr.mxu0 0.0
  %1912 = vmatpush2.msra.mxu0 0.0
  %1913 = vmatprep.subr.mxu0 0.0
  %1914 = vmatpush2.msra.mxu0 0.0
  %1915 = vmatprep.subr.mxu0 0.0
  %1916 = vmatpush2.msra.mxu0 0.0
  %1917 = vmatprep.subr.mxu0 0.0
  %1918 = vmatpush2.msra.mxu0 0.0
  %1919 = vmatprep.subr.mxu0 0.0
  %1920 = vmatpush2.msra.mxu0 0.0
  %1921 = vmatprep.subr.mxu0 0.0
  %1922 = vmatpush2.msra.mxu0 0.0
  %1923 = vmatprep.subr.mxu0 0.0
  %1924 = vmatpush2.msra.mxu0 0.0
  %1925 = vmatprep.mubr.f32.mxu0 0.0
  %1926 = vmatmul.mubr.f32.gmra.mxu0 %v823
  %v1927 = vpop.f32.mrf.mxu0
  %v1928 = vadd.f32 %v53, %v1927
  %v1929 = vpop.f32.mrf.mxu0
  %1930 = vmatprep.mubr.f32.mxu0 0.0
  %1931 = vmatmul.mubr.f32.gmra.mxu0 %v826
  %v1932 = vpop.f32.mrf.mxu0
  %v1933 = vadd.f32 %v53, %v1932
  %v1934 = vpop.f32.mrf.mxu0
  %1935 = vmatprep.mubr.f32.mxu0 0.0
  %1936 = vmatmul.mubr.f32.gmra.mxu0 %v829
  %v1937 = vpop.f32.mrf.mxu0
  %v1938 = vadd.f32 %v53, %v1937
  %v1939 = vpop.f32.mrf.mxu0
  %1940 = vmatprep.mubr.f32.mxu0 0.0
  %1941 = vmatmul.mubr.f32.gmra.mxu0 %v832
  %v1942 = vpop.f32.mrf.mxu0
  %v1943 = vadd.f32 %v53, %v1942
  %v1944 = vpop.f32.mrf.mxu0
  %1945 = vmatprep.mubr.f32.mxu0 0.0
  %1946 = vmatmul.mubr.f32.gmra.mxu0 %v835
  %v1947 = vpop.f32.mrf.mxu0
  %v1948 = vadd.f32 %v53, %v1947
  %v1949 = vpop.f32.mrf.mxu0
  %1950 = vmatprep.mubr.f32.mxu0 0.0
  %1951 = vmatmul.mubr.f32.gmra.mxu0 %v838
  %v1952 = vpop.f32.mrf.mxu0
  %v1953 = vadd.f32 %v53, %v1952
  %v1954 = vpop.f32.mrf.mxu0
  %1955 = vmatprep.mubr.f32.mxu0 0.0
  %1956 = vmatmul.mubr.f32.gmra.mxu0 %v841
  %v1957 = vpop.f32.mrf.mxu0
  %v1958 = vadd.f32 %v53, %v1957
  %v1959 = vpop.f32.mrf.mxu0
  %1960 = vmatprep.mubr.f32.mxu0 0.0
  %1961 = vmatmul.mubr.f32.gmra.mxu0 %v844
  %v1962 = vpop.f32.mrf.mxu0
  %v1963 = vadd.f32 %v53, %v1962
  %v1964 = vpop.f32.mrf.mxu0
  %1965 = vmatprep.mubr.f32.mxu0 0.0
  %1966 = vmatmul.mubr.f32.gmra.mxu0 %v968
  %v1967 = vpop.f32.mrf.mxu0
  %v1968 = vadd.f32 %v53, %v1967
  %v1969 = vpop.f32.mrf.mxu0
  %1970 = vmatprep.mubr.f32.mxu0 0.0
  %1971 = vmatmul.mubr.f32.gmra.mxu0 %v971
  %v1972 = vpop.f32.mrf.mxu0
  %v1973 = vadd.f32 %v53, %v1972
  %v1974 = vpop.f32.mrf.mxu0
  %1975 = vmatprep.mubr.f32.mxu0 0.0
  %1976 = vmatmul.mubr.f32.gmra.mxu0 %v974
  %v1977 = vpop.f32.mrf.mxu0
  %v1978 = vadd.f32 %v53, %v1977
  %v1979 = vpop.f32.mrf.mxu0
  %1980 = vmatprep.mubr.f32.mxu0 0.0
  %1981 = vmatmul.mubr.f32.gmra.mxu0 %v977
  %v1982 = vpop.f32.mrf.mxu0
  %v1983 = vadd.f32 %v53, %v1982
  %v1984 = vpop.f32.mrf.mxu0
  %1985 = vmatprep.mubr.f32.mxu0 0.0
  %1986 = vmatmul.mubr.f32.gmra.mxu0 %v980
  %v1987 = vpop.f32.mrf.mxu0
  %v1988 = vadd.f32 %v53, %v1987
  %v1989 = vpop.f32.mrf.mxu0
  %1990 = vmatprep.mubr.f32.mxu0 0.0
  %1991 = vmatmul.mubr.f32.gmra.mxu0 %v983
  %v1992 = vpop.f32.mrf.mxu0
  %v1993 = vadd.f32 %v53, %v1992
  %v1994 = vpop.f32.mrf.mxu0
  %1995 = vmatprep.mubr.f32.mxu0 0.0
  %1996 = vmatmul.mubr.f32.gmra.mxu0 %v986
  %v1997 = vpop.f32.mrf.mxu0
  %v1998 = vadd.f32 %v53, %v1997
  %v1999 = vpop.f32.mrf.mxu0
  %2000 = vmatprep.mubr.f32.mxu0 0.0
  %2001 = vmatmul.mubr.f32.gmra.mxu0 %v989
  %v2002 = vpop.f32.mrf.mxu0
  %v2003 = vadd.f32 %v53, %v2002
  %v2004 = vpop.f32.mrf.mxu0
  %2005 = vmatprep.mubr.f32.mxu0 0.0
  %2006 = vmatmul.mubr.f32.gmra.mxu0 %v1113
  %v2007 = vpop.f32.mrf.mxu0
  %v2008 = vadd.f32 %v53, %v2007
  %v2009 = vpop.f32.mrf.mxu0
  %2010 = vmatprep.mubr.f32.mxu0 0.0
  %2011 = vmatmul.mubr.f32.gmra.mxu0 %v1116
  %v2012 = vpop.f32.mrf.mxu0
  %v2013 = vadd.f32 %v53, %v2012
  %v2014 = vpop.f32.mrf.mxu0
  %2015 = vmatprep.mubr.f32.mxu0 0.0
  %2016 = vmatmul.mubr.f32.gmra.mxu0 %v1119
  %v2017 = vpop.f32.mrf.mxu0
  %v2018 = vadd.f32 %v53, %v2017
  %v2019 = vpop.f32.mrf.mxu0
  %2020 = vmatprep.mubr.f32.mxu0 0.0
  %2021 = vmatmul.mubr.f32.gmra.mxu0 %v1122
  %v2022 = vpop.f32.mrf.mxu0
  %v2023 = vadd.f32 %v53, %v2022
  %v2024 = vpop.f32.mrf.mxu0
  %2025 = vmatprep.mubr.f32.mxu0 0.0
  %2026 = vmatmul.mubr.f32.gmra.mxu0 %v1125
  %v2027 = vpop.f32.mrf.mxu0
  %v2028 = vadd.f32 %v53, %v2027
  %v2029 = vpop.f32.mrf.mxu0
  %2030 = vmatprep.mubr.f32.mxu0 0.0
  %2031 = vmatmul.mubr.f32.gmra.mxu0 %v1128
  %v2032 = vpop.f32.mrf.mxu0
  %v2033 = vadd.f32 %v53, %v2032
  %v2034 = vpop.f32.mrf.mxu0
  %2035 = vmatprep.mubr.f32.mxu0 0.0
  %2036 = vmatmul.mubr.f32.gmra.mxu0 %v1131
  %v2037 = vpop.f32.mrf.mxu0
  %v2038 = vadd.f32 %v53, %v2037
  %v2039 = vpop.f32.mrf.mxu0
  %2040 = vmatprep.mubr.f32.mxu0 0.0
  %2041 = vmatmul.mubr.f32.gmra.mxu0 %v1134
  %v2042 = vpop.f32.mrf.mxu0
  %v2043 = vadd.f32 %v53, %v2042
  %v2044 = vpop.f32.mrf.mxu0
  %2045 = vmatprep.mubr.f32.mxu0 0.0
  %2046 = vmatmul.mubr.f32.gmra.mxu0 %v1258
  %v2047 = vpop.f32.mrf.mxu0
  %v2048 = vadd.f32 %v53, %v2047
  %v2049 = vpop.f32.mrf.mxu0
  %2050 = vmatprep.mubr.f32.mxu0 0.0
  %2051 = vmatmul.mubr.f32.gmra.mxu0 %v1261
  %v2052 = vpop.f32.mrf.mxu0
  %v2053 = vadd.f32 %v53, %v2052
  %v2054 = vpop.f32.mrf.mxu0
  %2055 = vmatprep.mubr.f32.mxu0 0.0
  %2056 = vmatmul.mubr.f32.gmra.mxu0 %v1264
  %v2057 = vpop.f32.mrf.mxu0
  %v2058 = vadd.f32 %v53, %v2057
  %v2059 = vpop.f32.mrf.mxu0
  %2060 = vmatprep.mubr.f32.mxu0 0.0
  %2061 = vmatmul.mubr.f32.gmra.mxu0 %v1267
  %v2062 = vpop.f32.mrf.mxu0
  %v2063 = vadd.f32 %v53, %v2062
  %v2064 = vpop.f32.mrf.mxu0
  %2065 = vmatprep.mubr.f32.mxu0 0.0
  %2066 = vmatmul.mubr.f32.gmra.mxu0 %v1270
  %v2067 = vpop.f32.mrf.mxu0
  %v2068 = vadd.f32 %v53, %v2067
  %v2069 = vpop.f32.mrf.mxu0
  %2070 = vmatprep.mubr.f32.mxu0 0.0
  %2071 = vmatmul.mubr.f32.gmra.mxu0 %v1273
  %v2072 = vpop.f32.mrf.mxu0
  %v2073 = vadd.f32 %v53, %v2072
  %v2074 = vpop.f32.mrf.mxu0
  %2075 = vmatprep.mubr.f32.mxu0 0.0
  %2076 = vmatmul.mubr.f32.gmra.mxu0 %v1276
  %v2077 = vpop.f32.mrf.mxu0
  %v2078 = vadd.f32 %v53, %v2077
  %v2079 = vpop.f32.mrf.mxu0
  %2080 = vmatprep.mubr.f32.mxu0 0.0
  %2081 = vmatmul.mubr.f32.gmra.mxu0 %v1279
  %v2082 = vpop.f32.mrf.mxu0
  %v2083 = vadd.f32 %v53, %v2082
  %v2084 = vpop.f32.mrf.mxu0
  %2085 = vmatprep.mubr.f32.mxu0 0.0
  %2086 = vmatmul.mubr.f32.gmra.mxu0 %v1403
  %v2087 = vpop.f32.mrf.mxu0
  %v2088 = vadd.f32 %v53, %v2087
  %v2089 = vpop.f32.mrf.mxu0
  %2090 = vmatprep.mubr.f32.mxu0 0.0
  %2091 = vmatmul.mubr.f32.gmra.mxu0 %v1406
  %v2092 = vpop.f32.mrf.mxu0
  %v2093 = vadd.f32 %v53, %v2092
  %v2094 = vpop.f32.mrf.mxu0
  %2095 = vmatprep.mubr.f32.mxu0 0.0
  %2096 = vmatmul.mubr.f32.gmra.mxu0 %v1409
  %v2097 = vpop.f32.mrf.mxu0
  %v2098 = vadd.f32 %v53, %v2097
  %v2099 = vpop.f32.mrf.mxu0
  %2100 = vmatprep.mubr.f32.mxu0 0.0
  %2101 = vmatmul.mubr.f32.gmra.mxu0 %v1412
  %v2102 = vpop.f32.mrf.mxu0
  %v2103 = vadd.f32 %v53, %v2102
  %v2104 = vpop.f32.mrf.mxu0
  %2105 = vmatprep.mubr.f32.mxu0 0.0
  %2106 = vmatmul.mubr.f32.gmra.mxu0 %v1415
  %v2107 = vpop.f32.mrf.mxu0
  %v2108 = vadd.f32 %v53, %v2107
  %v2109 = vpop.f32.mrf.mxu0
  %2110 = vmatprep.mubr.f32.mxu0 0.0
  %2111 = vmatmul.mubr.f32.gmra.mxu0 %v1418
  %v2112 = vpop.f32.mrf.mxu0
  %v2113 = vadd.f32 %v53, %v2112
  %v2114 = vpop.f32.mrf.mxu0
  %2115 = vmatprep.mubr.f32.mxu0 0.0
  %2116 = vmatmul.mubr.f32.gmra.mxu0 %v1421
  %v2117 = vpop.f32.mrf.mxu0
  %v2118 = vadd.f32 %v53, %v2117
  %v2119 = vpop.f32.mrf.mxu0
  %2120 = vmatprep.mubr.f32.mxu0 0.0
  %2121 = vmatmul.mubr.f32.gmra.mxu0 %v1424
  %v2122 = vpop.f32.mrf.mxu0
  %v2123 = vadd.f32 %v53, %v2122
  %v2124 = vpop.f32.mrf.mxu0
  %2125 = vmatprep.mubr.f32.mxu0 0.0
  %2126 = vmatmul.mubr.f32.gmra.mxu0 %v1548
  %v2127 = vpop.f32.mrf.mxu0
  %v2128 = vadd.f32 %v53, %v2127
  %v2129 = vpop.f32.mrf.mxu0
  %2130 = vmatprep.mubr.f32.mxu0 0.0
  %2131 = vmatmul.mubr.f32.gmra.mxu0 %v1551
  %v2132 = vpop.f32.mrf.mxu0
  %v2133 = vadd.f32 %v53, %v2132
  %v2134 = vpop.f32.mrf.mxu0
  %2135 = vmatprep.mubr.f32.mxu0 0.0
  %2136 = vmatmul.mubr.f32.gmra.mxu0 %v1554
  %v2137 = vpop.f32.mrf.mxu0
  %v2138 = vadd.f32 %v53, %v2137
  %v2139 = vpop.f32.mrf.mxu0
  %2140 = vmatprep.mubr.f32.mxu0 0.0
  %2141 = vmatmul.mubr.f32.gmra.mxu0 %v1557
  %v2142 = vpop.f32.mrf.mxu0
  %v2143 = vadd.f32 %v53, %v2142
  %v2144 = vpop.f32.mrf.mxu0
  %2145 = vmatprep.mubr.f32.mxu0 0.0
  %2146 = vmatmul.mubr.f32.gmra.mxu0 %v1560
  %v2147 = vpop.f32.mrf.mxu0
  %v2148 = vadd.f32 %v53, %v2147
  %v2149 = vpop.f32.mrf.mxu0
  %2150 = vmatprep.mubr.f32.mxu0 0.0
  %2151 = vmatmul.mubr.f32.gmra.mxu0 %v1563
  %v2152 = vpop.f32.mrf.mxu0
  %v2153 = vadd.f32 %v53, %v2152
  %v2154 = vpop.f32.mrf.mxu0
  %2155 = vmatprep.mubr.f32.mxu0 0.0
  %2156 = vmatmul.mubr.f32.gmra.mxu0 %v1566
  %v2157 = vpop.f32.mrf.mxu0
  %v2158 = vadd.f32 %v53, %v2157
  %v2159 = vpop.f32.mrf.mxu0
  %2160 = vmatprep.mubr.f32.mxu0 0.0
  %2161 = vmatmul.mubr.f32.gmra.mxu0 %v1569
  %v2162 = vpop.f32.mrf.mxu0
  %v2163 = vadd.f32 %v53, %v2162
  %v2164 = vpop.f32.mrf.mxu0
  %2165 = vmatprep.mubr.f32.mxu0 0.0
  %2166 = vmatmul.mubr.f32.gmra.mxu0 %v1693
  %v2167 = vpop.f32.mrf.mxu0
  %v2168 = vadd.f32 %v53, %v2167
  %v2169 = vpop.f32.mrf.mxu0
  %2170 = vmatprep.mubr.f32.mxu0 0.0
  %2171 = vmatmul.mubr.f32.gmra.mxu0 %v1696
  %v2172 = vpop.f32.mrf.mxu0
  %v2173 = vadd.f32 %v53, %v2172
  %v2174 = vpop.f32.mrf.mxu0
  %2175 = vmatprep.mubr.f32.mxu0 0.0
  %2176 = vmatmul.mubr.f32.gmra.mxu0 %v1699
  %v2177 = vpop.f32.mrf.mxu0
  %v2178 = vadd.f32 %v53, %v2177
  %v2179 = vpop.f32.mrf.mxu0
  %2180 = vmatprep.mubr.f32.mxu0 0.0
  %2181 = vmatmul.mubr.f32.gmra.mxu0 %v1702
  %v2182 = vpop.f32.mrf.mxu0
  %v2183 = vadd.f32 %v53, %v2182
  %v2184 = vpop.f32.mrf.mxu0
  %2185 = vmatprep.mubr.f32.mxu0 0.0
  %2186 = vmatmul.mubr.f32.gmra.mxu0 %v1705
  %v2187 = vpop.f32.mrf.mxu0
  %v2188 = vadd.f32 %v53, %v2187
  %v2189 = vpop.f32.mrf.mxu0
  %2190 = vmatprep.mubr.f32.mxu0 0.0
  %2191 = vmatmul.mubr.f32.gmra.mxu0 %v1708
  %v2192 = vpop.f32.mrf.mxu0
  %v2193 = vadd.f32 %v53, %v2192
  %v2194 = vpop.f32.mrf.mxu0
  %2195 = vmatprep.mubr.f32.mxu0 0.0
  %2196 = vmatmul.mubr.f32.gmra.mxu0 %v1711
  %v2197 = vpop.f32.mrf.mxu0
  %v2198 = vadd.f32 %v53, %v2197
  %v2199 = vpop.f32.mrf.mxu0
  %2200 = vmatprep.mubr.f32.mxu0 0.0
  %2201 = vmatmul.mubr.f32.gmra.mxu0 %v1714
  %v2202 = vpop.f32.mrf.mxu0
  %v2203 = vadd.f32 %v53, %v2202
  %v2204 = vpop.f32.mrf.mxu0
  %2205 = vmatprep.mubr.f32.mxu0 0.0
  %2206 = vmatmul.mubr.f32.gmra.mxu0 %v1838
  %v2207 = vpop.f32.mrf.mxu0
  %v2208 = vadd.f32 %v53, %v2207
  %v2209 = vpop.f32.mrf.mxu0
  %2210 = vmatprep.mubr.f32.mxu0 0.0
  %2211 = vmatmul.mubr.f32.gmra.mxu0 %v1841
  %v2212 = vpop.f32.mrf.mxu0
  %v2213 = vadd.f32 %v53, %v2212
  %v2214 = vpop.f32.mrf.mxu0
  %2215 = vmatprep.mubr.f32.mxu0 0.0
  %2216 = vmatmul.mubr.f32.gmra.mxu0 %v1844
  %v2217 = vpop.f32.mrf.mxu0
  %v2218 = vadd.f32 %v53, %v2217
  %v2219 = vpop.f32.mrf.mxu0
  %2220 = vmatprep.mubr.f32.mxu0 0.0
  %2221 = vmatmul.mubr.f32.gmra.mxu0 %v1847
  %v2222 = vpop.f32.mrf.mxu0
  %v2223 = vadd.f32 %v53, %v2222
  %v2224 = vpop.f32.mrf.mxu0
  %2225 = vmatprep.mubr.f32.mxu0 0.0
  %2226 = vmatmul.mubr.f32.gmra.mxu0 %v1850
  %v2227 = vpop.f32.mrf.mxu0
  %v2228 = vadd.f32 %v53, %v2227
  %v2229 = vpop.f32.mrf.mxu0
  %2230 = vmatprep.mubr.f32.mxu0 0.0
  %2231 = vmatmul.mubr.f32.gmra.mxu0 %v1853
  %v2232 = vpop.f32.mrf.mxu0
  %v2233 = vadd.f32 %v53, %v2232
  %v2234 = vpop.f32.mrf.mxu0
  %2235 = vmatprep.mubr.f32.mxu0 0.0
  %2236 = vmatmul.mubr.f32.gmra.mxu0 %v1856
  %v2237 = vpop.f32.mrf.mxu0
  %v2238 = vadd.f32 %v53, %v2237
  %v2239 = vpop.f32.mrf.mxu0
  %2240 = vmatprep.mubr.f32.mxu0 0.0
  %2241 = vmatmul.mubr.f32.gmra.mxu0 %v1859
  %v2242 = vpop.f32.mrf.mxu0
  %v2243 = vadd.f32 %v53, %v2242
  %v2244 = vpop.f32.mrf.mxu0
  %2245 = vdwg.mxu0
  %2246 = vst.msk [vmem:[%s6] sm:$0xff] %vm119, %v1928
  %2247 = vst.msk [vmem:[%s6 + $0x8] sm:$0xff] %vm119, %v1933
  %2248 = vst.msk [vmem:[%s6 + $0x10] sm:$0xff] %vm119, %v1938
  %2249 = vst.msk [vmem:[%s6 + $0x18] sm:$0xff] %vm119, %v1943
  %2250 = vst.msk [vmem:[%s6 + $0x20] sm:$0xff] %vm119, %v1948
  %2251 = vst.msk [vmem:[%s6 + $0x28] sm:$0xff] %vm119, %v1953
  %2252 = vst.msk [vmem:[%s6 + $0x30] sm:$0xff] %vm119, %v1958
  %2253 = vst.msk [vmem:[%s6 + $0x38] sm:$0xff] %vm119, %v1963
  %2254 = vst.msk [vmem:[%s6 + $0x40] sm:$0xff] %vm119, %v1968
  %2255 = vst.msk [vmem:[%s6 + $0x48] sm:$0xff] %vm119, %v1973
  %2256 = vst.msk [vmem:[%s6 + $0x50] sm:$0xff] %vm119, %v1978
  %2257 = vst.msk [vmem:[%s6 + $0x58] sm:$0xff] %vm119, %v1983
  %2258 = vst.msk [vmem:[%s6 + $0x60] sm:$0xff] %vm119, %v1988
  %2259 = vst.msk [vmem:[%s6 + $0x68] sm:$0xff] %vm119, %v1993
  %2260 = vst.msk [vmem:[%s6 + $0x70] sm:$0xff] %vm119, %v1998
  %2261 = vst.msk [vmem:[%s6 + $0x78] sm:$0xff] %vm119, %v2003
  %2262 = vst.msk [vmem:[%s6 + $0x80] sm:$0xff] %vm119, %v2008
  %2263 = vst.msk [vmem:[%s6 + $0x88] sm:$0xff] %vm119, %v2013
  %2264 = vst.msk [vmem:[%s6 + $0x90] sm:$0xff] %vm119, %v2018
  %2265 = vst.msk [vmem:[%s6 + $0x98] sm:$0xff] %vm119, %v2023
  %2266 = vst.msk [vmem:[%s6 + $0xa0] sm:$0xff] %vm119, %v2028
  %2267 = vst.msk [vmem:[%s6 + $0xa8] sm:$0xff] %vm119, %v2033
  %2268 = vst.msk [vmem:[%s6 + $0xb0] sm:$0xff] %vm119, %v2038
  %2269 = vst.msk [vmem:[%s6 + $0xb8] sm:$0xff] %vm119, %v2043
  %2270 = vst.msk [vmem:[%s6 + $0xc0] sm:$0xff] %vm119, %v2048
  %2271 = vst.msk [vmem:[%s6 + $0xc8] sm:$0xff] %vm119, %v2053
  %2272 = vst.msk [vmem:[%s6 + $0xd0] sm:$0xff] %vm119, %v2058
  %2273 = vst.msk [vmem:[%s6 + $0xd8] sm:$0xff] %vm119, %v2063
  %2274 = vst.msk [vmem:[%s6 + $0xe0] sm:$0xff] %vm119, %v2068
  %2275 = vst.msk [vmem:[%s6 + $0xe8] sm:$0xff] %vm119, %v2073
  %2276 = vst.msk [vmem:[%s6 + $0xf0] sm:$0xff] %vm119, %v2078
  %2277 = vst.msk [vmem:[%s6 + $0xf8] sm:$0xff] %vm119, %v2083
  %2278 = vst.msk [vmem:[%s6 + $0x100] sm:$0xff] %vm119, %v2088
  %2279 = vst.msk [vmem:[%s6 + $0x108] sm:$0xff] %vm119, %v2093
  %2280 = vst.msk [vmem:[%s6 + $0x110] sm:$0xff] %vm119, %v2098
  %2281 = vst.msk [vmem:[%s6 + $0x118] sm:$0xff] %vm119, %v2103
  %2282 = vst.msk [vmem:[%s6 + $0x120] sm:$0xff] %vm119, %v2108
  %2283 = vst.msk [vmem:[%s6 + $0x128] sm:$0xff] %vm119, %v2113
  %2284 = vst.msk [vmem:[%s6 + $0x130] sm:$0xff] %vm119, %v2118
  %2285 = vst.msk [vmem:[%s6 + $0x138] sm:$0xff] %vm119, %v2123
  %2286 = vst.msk [vmem:[%s6 + $0x140] sm:$0xff] %vm119, %v2128
  %2287 = vst.msk [vmem:[%s6 + $0x148] sm:$0xff] %vm119, %v2133
  %2288 = vst.msk [vmem:[%s6 + $0x150] sm:$0xff] %vm119, %v2138
  %2289 = vst.msk [vmem:[%s6 + $0x158] sm:$0xff] %vm119, %v2143
  %2290 = vst.msk [vmem:[%s6 + $0x160] sm:$0xff] %vm119, %v2148
  %2291 = vst.msk [vmem:[%s6 + $0x168] sm:$0xff] %vm119, %v2153
  %2292 = vst.msk [vmem:[%s6 + $0x170] sm:$0xff] %vm119, %v2158
  %2293 = vst.msk [vmem:[%s6 + $0x178] sm:$0xff] %vm119, %v2163
  %2294 = vst.msk [vmem:[%s6 + $0x180] sm:$0xff] %vm119, %v2168
  %2295 = vst.msk [vmem:[%s6 + $0x188] sm:$0xff] %vm119, %v2173
  %2296 = vst.msk [vmem:[%s6 + $0x190] sm:$0xff] %vm119, %v2178
  %2297 = vst.msk [vmem:[%s6 + $0x198] sm:$0xff] %vm119, %v2183
  %2298 = vst.msk [vmem:[%s6 + $0x1a0] sm:$0xff] %vm119, %v2188
  %2299 = vst.msk [vmem:[%s6 + $0x1a8] sm:$0xff] %vm119, %v2193
  %2300 = vst.msk [vmem:[%s6 + $0x1b0] sm:$0xff] %vm119, %v2198
  %2301 = vst.msk [vmem:[%s6 + $0x1b8] sm:$0xff] %vm119, %v2203
  %2302 = vst.msk [vmem:[%s6 + $0x1c0] sm:$0xff] %vm119, %v2208
  %2303 = vst.msk [vmem:[%s6 + $0x1c8] sm:$0xff] %vm119, %v2213
  %2304 = vst.msk [vmem:[%s6 + $0x1d0] sm:$0xff] %vm119, %v2218
  %2305 = vst.msk [vmem:[%s6 + $0x1d8] sm:$0xff] %vm119, %v2223
  %2306 = vst.msk [vmem:[%s6 + $0x1e0] sm:$0xff] %vm119, %v2228
  %2307 = vst.msk [vmem:[%s6 + $0x1e8] sm:$0xff] %vm119, %v2233
  %2308 = vst.msk [vmem:[%s6 + $0x1f0] sm:$0xff] %vm119, %v2238
  %2309 = vst.msk [vmem:[%s6 + $0x1f8] sm:$0xff] %vm119, %v2243
  // Predicated region
  $region26: #{rnn_classifier_forward.1} parent=0 // pred_check
    _
  $region27: #{rnn_classifier_forward.1} parent=0 // pred_check_branch
    %2311 = sbr.rel (0) target = $region29
  $region28: #{rnn_classifier_forward.1} parent=0 // pred_region
    _
  $region29: #{rnn_classifier_forward.1} parent=0 // pred_fallthru
    _
  // Predicated region
  $region30: #{rnn_classifier_forward.1} parent=0 // pred_check
    _
  $region31: #{rnn_classifier_forward.1} parent=0 // pred_check_branch
    %2313 = sbr.rel (0) target = $region33
  $region32: #{rnn_classifier_forward.1} parent=0 // pred_region
    _
  $region33: #{rnn_classifier_forward.1} parent=0 // pred_fallthru
    _

</llo_original>
